<compile_context>
chip_gen: v6e
topology: v6e:2x2x1
jax: 0.10.0
libtpu: 0.0.40
codegen_flags: <defaults>
</compile_context>

<pallas_src>
import math

import jax
import jax.numpy as jnp
from jax import lax
from jax.experimental import pallas as pl
from jax.experimental.pallas import tpu as pltpu


def _gru_pos_encode_kernel(x_ref, len_ref, wih_ref, whh_ref, bih_ref, bhn_ref,
                           wm_t_ref, bm_ref, out_ref, gx_ref):
    """One batch tile of the GRU positional encoding (activations time-major).

    x_ref:    (T, TB, Dp)    bf16 input slab for this batch tile
    len_ref:  (1, TB, 1)     int32 valid length per row of the tile
    wih_ref:  (Dp, 3*Dp)     bf16 gate-fused, pre-transposed GRU input weights (r|z|n)
    whh_ref:  (Dp, 3*Dp)     bf16 gate-fused, pre-transposed GRU hidden weights
    bih_ref:  (1, 3*Dp)      f32 b_ih (b_hh folded in for the r/z gates)
    bhn_ref:  (1, Dp)        f32 b_hh of the n gate (it sits inside r * (...))
    wm_t_ref: (Dp, Dp)       bf16 Linear weight, pre-transposed
    bm_ref:   (1, Dp)        f32 Linear bias
    out_ref:  (T, TB, Dp)    f32 mlp(padded GRU outputs)
    gx_ref:   (T, TB, 3*Dp)  bf16 fused per-gate input projections
                             (n-gate lane slot reused to hold the GRU output sequence)
    """
    T, TB, Dp = x_ref.shape

    # Hot path 1: fused input projection for all timesteps / all 3 gates in ONE
    # bf16 MXU pass; biases folded in; stored bf16 (halves scratch VMEM traffic).
    x_flat = x_ref[...].reshape(T * TB, Dp)
    gx = jnp.dot(x_flat, wih_ref[...], preferred_element_type=jnp.float32)
    gx = gx + bih_ref[...]
    gx_ref[...] = gx.astype(jnp.bfloat16).reshape(T, TB, 3 * Dp)

    # Loop-invariant operands hoisted off the serial critical path.
    whh_rzn = whh_ref[...]                                    # (Dp, 3*Dp) bf16
    bhn = jnp.broadcast_to(bhn_ref[...], (TB, Dp))            # (TB, Dp) f32, hoisted

    # Hot path 2: sequential GRU recurrence; h carried f32 in vregs, ONE fused
    # bf16 h @ (Dp, 3*Dp) MXU launch per step (instead of three N=Dp launches).
    def step(t, h):
        gh = jnp.dot(h.astype(jnp.bfloat16), whh_rzn,
                     preferred_element_type=jnp.float32)      # (TB, 3*Dp) f32
        gx_t = gx_ref[t].astype(jnp.float32)                  # (TB, 3*Dp)
        r = jax.nn.sigmoid(gx_t[:, :Dp] + gh[:, :Dp])
        z = jax.nn.sigmoid(gx_t[:, Dp:2 * Dp] + gh[:, Dp:2 * Dp])
        n = jnp.tanh(gx_t[:, 2 * Dp:] + r * (gh[:, 2 * Dp:] + bhn))
        h_new = (1.0 - z) * n + z * h
        # n-gate lane slot is dead after step t: reuse it as the GRU output sequence.
        gx_ref[t, :, 2 * Dp:] = h_new.astype(jnp.bfloat16)
        return h_new

    # Never fall back to unroll=1 (a visible non-unrolled loop costs ~-35%); gate
    # full unroll on the per-step working set so it doesn't explode vreg pressure.
    if T <= 16 and TB * Dp <= 16 * 1024:
        unroll = True
    elif T % 8 == 0:
        unroll = 8
    elif T % 4 == 0:
        unroll = 4
    else:
        unroll = 2
    lax.fori_loop(0, T, step, jnp.zeros((TB, Dp), jnp.float32), unroll=unroll)

    # Hot path 3: pad_packed zeroing as ONE vectorized, NaN-safe pass (off the serial
    # loop), then the Linear ("mlp") layer as a single bf16 MXU pass over all positions.
    t_iota = lax.broadcasted_iota(jnp.int32, (T, TB, 1), 0)
    valid = t_iota < len_ref[...]                             # (T, TB, 1)
    hseq = jnp.where(valid, gx_ref[:, :, 2 * Dp:], 0).reshape(T * TB, Dp)   # bf16
    out = jnp.dot(hseq, wm_t_ref[...], preferred_element_type=jnp.float32) + bm_ref[...]
    out_ref[...] = out.reshape(T, TB, Dp)


def _tpu_vmem_capacity_bytes():
    """Per-core VMEM capacity; conservative (v7x, 64 MiB) fallback if unqueryable."""
    try:
        return int(pltpu.get_tpu_info().vmem_capacity_bytes)
    except Exception:
        return 64 * 1024 * 1024


def _pick_batch_tile(B, T, Dp, tile_budget_bytes):
    """Pick a batch tile TB bounded by BOTH vreg pressure and the VMEM budget.

    vreg cap: ~8 live (TB, Dp) f32 temporaries (h, gh, gx_t slices, r, z, n, blends)
    must fit the 256 KiB register file or the serial loop spills to VMEM.
    VMEM per batch row: x (bf16, 2x buffered) + out (f32, 2x buffered) + gx scratch
    (bf16, 3*Dp lanes, single copy) = 18 * T * Dp bytes.
    """
    vreg_cap = max(8, ((256 * 1024) // (8 * Dp * 4)) // 8 * 8)
    per_row = T * Dp * (2 * 2 + 2 * 4 + 3 * 2)
    vmem_cap = max(8, (tile_budget_bytes // per_row) // 8 * 8)
    cap = min(vreg_cap, vmem_cap)
    if cap >= B:
        if B >= 16:
            # Split into >=2 tiles so both v7x TensorCores get work; on 1-TC
            # v5e/v6e this only costs one extra ~0.35us grid step.
            tb = max(8, min(cap, ((B + 1) // 2) // 8 * 8))
        else:
            return B, B                      # small batch: one tile covering it all
    else:
        tb = cap
    b_pad = -(-B // tb) * tb
    return tb, b_pad
    # TODO(synk): for very long T where even TB=8 overflows the VMEM budget, chunk
    # the two big matmuls over T with pltpu.emit_pipeline (the recurrence stays serial).


def make_params(d_model, key):
    """Deterministic parameter init matching the shapes of nn.GRU + nn.Linear."""
    k = 1.0 / math.sqrt(d_model)
    keys = jax.random.split(key, 6)
    w_ih = jax.random.uniform(keys[0], (3 * d_model, d_model), jnp.float32, -k, k)
    w_hh = jax.random.uniform(keys[1], (3 * d_model, d_model), jnp.float32, -k, k)
    b_ih = jax.random.uniform(keys[2], (3 * d_model,), jnp.float32, -k, k)
    b_hh = jax.random.uniform(keys[3], (3 * d_model,), jnp.float32, -k, k)
    w_mlp = jax.random.uniform(keys[4], (d_model, d_model), jnp.float32, -k, k)
    b_mlp = jax.random.uniform(keys[5], (d_model,), jnp.float32, -k, k)
    return dict(w_ih=w_ih, w_hh=w_hh, b_ih=b_ih, b_hh=b_hh, w_mlp=w_mlp, b_mlp=b_mlp)


def rnn_positional_encoding(x, padding_mask, params):
    """x: (B, T, D) float, padding_mask: (B, T) bool/int (right-padded).

    Returns (B, T_out, D) with T_out = max(lengths) (full T when lengths are traced).
    """
    B, T, D = x.shape
    lengths = jnp.sum(padding_mask.astype(jnp.float32), axis=1)        # (B,)

    # Lane-pad the model dim so per-gate slices sit on 128-lane boundaries.
    Dp = max(128, -(-D // 128) * 128)

    # Generation-aware VMEM sizing (v5e/v6e: 128 MiB, v7x: 64 MiB per core).
    vmem_capacity = _tpu_vmem_capacity_bytes()
    vmem_limit = (vmem_capacity * 7) // 8
    w_bytes = (2 * (Dp * 3 * Dp) + Dp * Dp) * 2            # W_ih^T, W_hh^T, W_mlp^T (bf16)
    b_bytes = (3 * Dp + Dp + Dp) * 4                       # biases (f32)
    tile_budget = max(2 * 1024 * 1024,
                      vmem_limit - 2 * (w_bytes + b_bytes) - (2 << 20))

    tb, b_pad = _pick_batch_tile(B, T, Dp, tile_budget)
    n_tiles = b_pad // tb

    # Activations: bf16 across the pallas_call boundary (half the DMA), lane-padded,
    # time-major so the recurrence indexes/stores along the leading axis.
    x_p = x.astype(jnp.bfloat16)
    if b_pad != B or Dp != D:
        x_p = jnp.pad(x_p, ((0, b_pad - B), (0, 0), (0, Dp - D)))
    x_tm = jnp.transpose(x_p, (1, 0, 2))                               # (T, B_pad, Dp)
    len_i = lengths.astype(jnp.int32)
    if b_pad != B:
        len_i = jnp.pad(len_i, (0, b_pad - B))                         # padded rows: length 0
    len3 = len_i.reshape(1, b_pad, 1)

    # Gate-FUSED, pre-transposed, lane-padded weights (PyTorch gate order r, z, n).
    def pad_dd(w):                                                     # (D,D) -> (Dp,Dp)
        return jnp.pad(w, ((0, Dp - D), (0, Dp - D)))

    w_ih = params["w_ih"].reshape(3, D, D).astype(jnp.float32)
    w_hh = params["w_hh"].reshape(3, D, D).astype(jnp.float32)
    wih_cat = jnp.concatenate([pad_dd(w_ih[g].T) for g in range(3)],
                              axis=1).astype(jnp.bfloat16)             # (Dp, 3*Dp)
    whh_cat = jnp.concatenate([pad_dd(w_hh[g].T) for g in range(3)],
                              axis=1).astype(jnp.bfloat16)             # (Dp, 3*Dp)

    b_ih = params["b_ih"].reshape(3, D).astype(jnp.float32)
    b_hh = params["b_hh"].reshape(3, D).astype(jnp.float32)
    # Fold b_hh into b_ih for the r/z gates; the n-gate's b_hh sits inside r*(...).
    bih_f = jnp.concatenate([b_ih[0:2] + b_hh[0:2], b_ih[2:3]], axis=0)  # (3, D)
    bih_f = jnp.pad(bih_f, ((0, 0), (0, Dp - D))).reshape(1, 3 * Dp)
    bhn = jnp.pad(b_hh[2], (0, Dp - D)).reshape(1, Dp)

    wm_t = pad_dd(params["w_mlp"].astype(jnp.float32).T).astype(jnp.bfloat16)  # (Dp, Dp)
    bm = jnp.pad(params["b_mlp"].astype(jnp.float32), (0, Dp - D)).reshape(1, Dp)

    def whole(shape):                 # weights/biases: same block at every grid step
        n = len(shape)
        return pl.BlockSpec(shape, lambda i, _n=n: (0,) * _n)

    out_tm = pl.pallas_call(
        _gru_pos_encode_kernel,
        out_shape=jax.ShapeDtypeStruct((T, b_pad, Dp), jnp.float32),
        grid=(n_tiles,),
        in_specs=[
            pl.BlockSpec((T, tb, Dp), lambda i: (0, i, 0)),            # x (time-major, bf16)
            pl.BlockSpec((1, tb, 1), lambda i: (0, i, 0)),             # lengths
            whole((Dp, 3 * Dp)),                                       # W_ih^T (gate-fused)
            whole((Dp, 3 * Dp)),                                       # W_hh^T (gate-fused)
            whole((1, 3 * Dp)),                                        # folded b_ih
            whole((1, Dp)),                                            # b_hh (n gate)
            whole((Dp, Dp)),                                           # W_mlp^T
            whole((1, Dp)),                                            # b_mlp
        ],
        out_specs=pl.BlockSpec((T, tb, Dp), lambda i: (0, i, 0)),
        scratch_shapes=[
            pltpu.VMEM((T, tb, 3 * Dp), jnp.bfloat16),   # fused gate projections / GRU outputs
        ],
        compiler_params=pltpu.CompilerParams(
            dimension_semantics=("parallel",),          # batch tiles: megacore-splittable
            vmem_limit_bytes=int(vmem_limit),           # generation-aware (v5e/v6e vs v7x)
        ),
    )(x_tm, len3, wih_cat, whh_cat, bih_f, bhn, wm_t, bm)

    out = jnp.transpose(out_tm, (1, 0, 2))[:B, :, :D]                  # (B, T, D)

    # pad_packed_sequence trims to the longest sequence in the batch; like PyTorch's
    # lengths.cpu() this needs a concrete value — under jit, return the full T.
    try:
        t_out = int(jnp.max(lengths))
    except jax.errors.ConcretizationTypeError:
        t_out = T   # TODO(synk): dynamic trim to max(lengths) has no static-shape jit equivalent
    return out[:, :t_out, :]


if __name__ == "__main__":
    B, T, D = 2, 8, 32
    key = jax.random.PRNGKey(0)
    k_x, k_p = jax.random.split(key)

    x = jax.random.normal(k_x, (B, T, D), jnp.float32)
    lengths = jnp.array([8, 5], dtype=jnp.int32)
    padding_mask = (jnp.arange(T)[None, :] < lengths[:, None]).astype(jnp.int32)  # (B, T)

    params = make_params(D, k_p)

    out = rnn_positional_encoding(x, padding_mask, params)
    out = jax.block_until_ready(out)
    assert out.shape == (B, 8, D), out.shape
    assert bool(jnp.all(jnp.isfinite(out))), "non-finite output"
    print("KERNEL_OK")
</pallas_src>

<mosaic_0001>
module attributes {stable_mosaic.version = 11 : i64} {
  func.func @_gru_pos_encode_kernel(%arg0: i32, %arg1: memref<8x2x128xbf16, #tpu.memory_space<vmem>>, %arg2: memref<1x2x1xi32, #tpu.memory_space<vmem>>, %arg3: memref<128x384xbf16, #tpu.memory_space<vmem>>, %arg4: memref<128x384xbf16, #tpu.memory_space<vmem>>, %arg5: memref<1x384xf32, #tpu.memory_space<vmem>>, %arg6: memref<1x128xf32, #tpu.memory_space<vmem>>, %arg7: memref<128x128xbf16, #tpu.memory_space<vmem>>, %arg8: memref<1x128xf32, #tpu.memory_space<vmem>>, %arg9: memref<8x2x128xf32, #tpu.memory_space<vmem>>, %arg10: memref<8x2x384xbf16, #tpu.memory_space<vmem>>) attributes {dimension_semantics = [#tpu.dimension_semantics<parallel>], iteration_bounds = array<i64: 1>, scalar_prefetch = 0 : i64, scratch_operands = 1 : i64, tpu.core_type = #tpu.core_type<tc>, window_params = [{transform_indices = @transform_0, window_bounds = array<i64: 8, 2, 128>}, {transform_indices = @transform_1, window_bounds = array<i64: 1, 2, 1>}, {pipeline_mode = #tpu.pipeline_mode<synchronous>, transform_indices = @transform_2, window_bounds = array<i64: 128, 384>}, {pipeline_mode = #tpu.pipeline_mode<synchronous>, transform_indices = @transform_3, window_bounds = array<i64: 128, 384>}, {pipeline_mode = #tpu.pipeline_mode<synchronous>, transform_indices = @transform_4, window_bounds = array<i64: 1, 384>}, {pipeline_mode = #tpu.pipeline_mode<synchronous>, transform_indices = @transform_5, window_bounds = array<i64: 1, 128>}, {pipeline_mode = #tpu.pipeline_mode<synchronous>, transform_indices = @transform_6, window_bounds = array<i64: 128, 128>}, {pipeline_mode = #tpu.pipeline_mode<synchronous>, transform_indices = @transform_7, window_bounds = array<i64: 1, 128>}, {transform_indices = @transform_8, window_bounds = array<i64: 8, 2, 128>}]} {
    %c0 = arith.constant 0 : index
    %c0_0 = arith.constant 0 : index
    %c0_1 = arith.constant 0 : index
    %0 = vector.load %arg1[%c0, %c0_0, %c0_1] : memref<8x2x128xbf16, #tpu.memory_space<vmem>>, vector<8x2x128xbf16>
    %1 = vector.shape_cast %0 : vector<8x2x128xbf16> to vector<16x128xbf16>
    %c0_2 = arith.constant 0 : index
    %c0_3 = arith.constant 0 : index
    %2 = vector.load %arg3[%c0_2, %c0_3] : memref<128x384xbf16, #tpu.memory_space<vmem>>, vector<128x384xbf16>
    %cst = arith.constant dense<0.000000e+00> : vector<16x384xf32>
    %3 = tpu.matmul %1, %2, %cst {dimension_numbers = #tpu.dot_dimension_numbers<[1], [0], [0], [1], [0, 0, 1, 1], [], []>} : vector<16x128xbf16>, vector<128x384xbf16>, vector<16x384xf32> -> vector<16x384xf32>
    %c0_4 = arith.constant 0 : index
    %c0_5 = arith.constant 0 : index
    %4 = vector.load %arg5[%c0_4, %c0_5] : memref<1x384xf32, #tpu.memory_space<vmem>>, vector<1x384xf32>
    %5 = vector.broadcast %4 : vector<1x384xf32> to vector<16x384xf32>
    %6 = arith.addf %3, %5 : vector<16x384xf32>
    %7 = arith.truncf %6 : vector<16x384xf32> to vector<16x384xbf16>
    %8 = vector.shape_cast %7 : vector<16x384xbf16> to vector<8x2x384xbf16>
    %c0_6 = arith.constant 0 : index
    %c0_7 = arith.constant 0 : index
    %c0_8 = arith.constant 0 : index
    %9 = vector.load %arg10[%c0_6, %c0_7, %c0_8] : memref<8x2x384xbf16, #tpu.memory_space<vmem>>, vector<8x2x384xbf16>
    tpu.vector_store %arg10[%c0_6, %c0_7, %c0_8], %8 {strides = array<i32>} : memref<8x2x384xbf16, #tpu.memory_space<vmem>>, vector<8x2x384xbf16>,
    %c0_9 = arith.constant 0 : index
    %c0_10 = arith.constant 0 : index
    %10 = vector.load %arg4[%c0_9, %c0_10] : memref<128x384xbf16, #tpu.memory_space<vmem>>, vector<128x384xbf16>
    %c0_11 = arith.constant 0 : index
    %c0_12 = arith.constant 0 : index
    %11 = vector.load %arg6[%c0_11, %c0_12] : memref<1x128xf32, #tpu.memory_space<vmem>>, vector<1x128xf32>
    %12 = vector.shape_cast %11 : vector<1x128xf32> to vector<1x128xf32>
    %13 = vector.broadcast %12 : vector<1x128xf32> to vector<2x128xf32>
    %cst_13 = arith.constant 0.000000e+00 : f32
    %14 = vector.broadcast %cst_13 : f32 to vector<2x128xf32>
    %c0_i32 = arith.constant 0 : i32
    %15 = arith.truncf %14 : vector<2x128xf32> to vector<2x128xbf16>
    %cst_14 = arith.constant dense<0.000000e+00> : vector<2x384xf32>
    %16 = tpu.matmul %15, %10, %cst_14 {dimension_numbers = #tpu.dot_dimension_numbers<[1], [0], [0], [1], [0, 0, 1, 1], [], []>} : vector<2x128xbf16>, vector<128x384xbf16>, vector<2x384xf32> -> vector<2x384xf32>
    %17 = arith.index_cast %c0_i32 : i32 to index
    %c0_15 = arith.constant 0 : index
    %c0_16 = arith.constant 0 : index
    %18 = vector.load %arg10[%17, %c0_15, %c0_16] : memref<8x2x384xbf16, #tpu.memory_space<vmem>>, vector<1x2x384xbf16>
    %19 = vector.shape_cast %18 : vector<1x2x384xbf16> to vector<2x384xbf16>
    %20 = arith.extf %19 : vector<2x384xbf16> to vector<2x384xf32>
    %21 = vector.extract_strided_slice %20 {offsets = [0, 0], sizes = [2, 128], strides = [1, 1]} : vector<2x384xf32> to vector<2x128xf32>
    %22 = vector.extract_strided_slice %16 {offsets = [0, 0], sizes = [2, 128], strides = [1, 1]} : vector<2x384xf32> to vector<2x128xf32>
    %23 = arith.addf %21, %22 : vector<2x128xf32>
    %24 = arith.negf %23 : vector<2x128xf32>
    %25 = math.exp %24 : vector<2x128xf32>
    %cst_17 = arith.constant 1.000000e+00 : f32
    %26 = vector.broadcast %cst_17 : f32 to vector<2x128xf32>
    %27 = arith.addf %26, %25 : vector<2x128xf32>
    %28 = arith.divf %26, %27 : vector<2x128xf32>
    %29 = vector.extract_strided_slice %20 {offsets = [0, 128], sizes = [2, 128], strides = [1, 1]} : vector<2x384xf32> to vector<2x128xf32>
    %30 = vector.extract_strided_slice %16 {offsets = [0, 128], sizes = [2, 128], strides = [1, 1]} : vector<2x384xf32> to vector<2x128xf32>
    %31 = arith.addf %29, %30 : vector<2x128xf32>
    %32 = arith.negf %31 : vector<2x128xf32>
    %33 = math.exp %32 : vector<2x128xf32>
    %cst_18 = arith.constant 1.000000e+00 : f32
    %34 = vector.broadcast %cst_18 : f32 to vector<2x128xf32>
    %35 = arith.addf %34, %33 : vector<2x128xf32>
    %36 = arith.divf %34, %35 : vector<2x128xf32>
    %37 = vector.extract_strided_slice %20 {offsets = [0, 256], sizes = [2, 128], strides = [1, 1]} : vector<2x384xf32> to vector<2x128xf32>
    %38 = vector.extract_strided_slice %16 {offsets = [0, 256], sizes = [2, 128], strides = [1, 1]} : vector<2x384xf32> to vector<2x128xf32>
    %39 = arith.addf %38, %13 : vector<2x128xf32>
    %40 = arith.mulf %28, %39 : vector<2x128xf32>
    %41 = arith.addf %37, %40 : vector<2x128xf32>
    %42 = math.tanh %41 : vector<2x128xf32>
    %cst_19 = arith.constant 1.000000e+00 : f32
    %43 = vector.broadcast %cst_19 : f32 to vector<2x128xf32>
    %44 = arith.subf %43, %36 : vector<2x128xf32>
    %45 = arith.mulf %44, %42 : vector<2x128xf32>
    %46 = arith.mulf %36, %14 : vector<2x128xf32>
    %47 = arith.addf %45, %46 : vector<2x128xf32>
    %48 = arith.truncf %47 : vector<2x128xf32> to vector<2x128xbf16>
    %49 = arith.index_cast %c0_i32 : i32 to index
    %c0_20 = arith.constant 0 : index
    %c256 = arith.constant 256 : index
    %50 = vector.load %arg10[%49, %c0_20, %c256] : memref<8x2x384xbf16, #tpu.memory_space<vmem>>, vector<1x2x128xbf16>
    %51 = vector.shape_cast %50 : vector<1x2x128xbf16> to vector<2x128xbf16>
    %52 = vector.shape_cast %48 : vector<2x128xbf16> to vector<1x2x128xbf16>
    tpu.vector_store %arg10[%49, %c0_20, %c256], %52 {strides = array<i32>} : memref<8x2x384xbf16, #tpu.memory_space<vmem>>, vector<1x2x128xbf16>,
    %c1_i32 = arith.constant 1 : i32
    %53 = arith.truncf %47 : vector<2x128xf32> to vector<2x128xbf16>
    %cst_21 = arith.constant dense<0.000000e+00> : vector<2x384xf32>
    %54 = tpu.matmul %53, %10, %cst_21 {dimension_numbers = #tpu.dot_dimension_numbers<[1], [0], [0], [1], [0, 0, 1, 1], [], []>} : vector<2x128xbf16>, vector<128x384xbf16>, vector<2x384xf32> -> vector<2x384xf32>
    %55 = arith.index_cast %c1_i32 : i32 to index
    %c0_22 = arith.constant 0 : index
    %c0_23 = arith.constant 0 : index
    %56 = vector.load %arg10[%55, %c0_22, %c0_23] : memref<8x2x384xbf16, #tpu.memory_space<vmem>>, vector<1x2x384xbf16>
    %57 = vector.shape_cast %56 : vector<1x2x384xbf16> to vector<2x384xbf16>
    %58 = arith.extf %57 : vector<2x384xbf16> to vector<2x384xf32>
    %59 = vector.extract_strided_slice %58 {offsets = [0, 0], sizes = [2, 128], strides = [1, 1]} : vector<2x384xf32> to vector<2x128xf32>
    %60 = vector.extract_strided_slice %54 {offsets = [0, 0], sizes = [2, 128], strides = [1, 1]} : vector<2x384xf32> to vector<2x128xf32>
    %61 = arith.addf %59, %60 : vector<2x128xf32>
    %62 = arith.negf %61 : vector<2x128xf32>
    %63 = math.exp %62 : vector<2x128xf32>
    %cst_24 = arith.constant 1.000000e+00 : f32
    %64 = vector.broadcast %cst_24 : f32 to vector<2x128xf32>
    %65 = arith.addf %64, %63 : vector<2x128xf32>
    %66 = arith.divf %64, %65 : vector<2x128xf32>
    %67 = vector.extract_strided_slice %58 {offsets = [0, 128], sizes = [2, 128], strides = [1, 1]} : vector<2x384xf32> to vector<2x128xf32>
    %68 = vector.extract_strided_slice %54 {offsets = [0, 128], sizes = [2, 128], strides = [1, 1]} : vector<2x384xf32> to vector<2x128xf32>
    %69 = arith.addf %67, %68 : vector<2x128xf32>
    %70 = arith.negf %69 : vector<2x128xf32>
    %71 = math.exp %70 : vector<2x128xf32>
    %cst_25 = arith.constant 1.000000e+00 : f32
    %72 = vector.broadcast %cst_25 : f32 to vector<2x128xf32>
    %73 = arith.addf %72, %71 : vector<2x128xf32>
    %74 = arith.divf %72, %73 : vector<2x128xf32>
    %75 = vector.extract_strided_slice %58 {offsets = [0, 256], sizes = [2, 128], strides = [1, 1]} : vector<2x384xf32> to vector<2x128xf32>
    %76 = vector.extract_strided_slice %54 {offsets = [0, 256], sizes = [2, 128], strides = [1, 1]} : vector<2x384xf32> to vector<2x128xf32>
    %77 = arith.addf %76, %13 : vector<2x128xf32>
    %78 = arith.mulf %66, %77 : vector<2x128xf32>
    %79 = arith.addf %75, %78 : vector<2x128xf32>
    %80 = math.tanh %79 : vector<2x128xf32>
    %cst_26 = arith.constant 1.000000e+00 : f32
    %81 = vector.broadcast %cst_26 : f32 to vector<2x128xf32>
    %82 = arith.subf %81, %74 : vector<2x128xf32>
    %83 = arith.mulf %82, %80 : vector<2x128xf32>
    %84 = arith.mulf %74, %47 : vector<2x128xf32>
    %85 = arith.addf %83, %84 : vector<2x128xf32>
    %86 = arith.truncf %85 : vector<2x128xf32> to vector<2x128xbf16>
    %87 = arith.index_cast %c1_i32 : i32 to index
    %c0_27 = arith.constant 0 : index
    %c256_28 = arith.constant 256 : index
    %88 = vector.load %arg10[%87, %c0_27, %c256_28] : memref<8x2x384xbf16, #tpu.memory_space<vmem>>, vector<1x2x128xbf16>
    %89 = vector.shape_cast %88 : vector<1x2x128xbf16> to vector<2x128xbf16>
    %90 = vector.shape_cast %86 : vector<2x128xbf16> to vector<1x2x128xbf16>
    tpu.vector_store %arg10[%87, %c0_27, %c256_28], %90 {strides = array<i32>} : memref<8x2x384xbf16, #tpu.memory_space<vmem>>, vector<1x2x128xbf16>,
    %c2_i32 = arith.constant 2 : i32
    %91 = arith.truncf %85 : vector<2x128xf32> to vector<2x128xbf16>
    %cst_29 = arith.constant dense<0.000000e+00> : vector<2x384xf32>
    %92 = tpu.matmul %91, %10, %cst_29 {dimension_numbers = #tpu.dot_dimension_numbers<[1], [0], [0], [1], [0, 0, 1, 1], [], []>} : vector<2x128xbf16>, vector<128x384xbf16>, vector<2x384xf32> -> vector<2x384xf32>
    %93 = arith.index_cast %c2_i32 : i32 to index
    %c0_30 = arith.constant 0 : index
    %c0_31 = arith.constant 0 : index
    %94 = vector.load %arg10[%93, %c0_30, %c0_31] : memref<8x2x384xbf16, #tpu.memory_space<vmem>>, vector<1x2x384xbf16>
    %95 = vector.shape_cast %94 : vector<1x2x384xbf16> to vector<2x384xbf16>
    %96 = arith.extf %95 : vector<2x384xbf16> to vector<2x384xf32>
    %97 = vector.extract_strided_slice %96 {offsets = [0, 0], sizes = [2, 128], strides = [1, 1]} : vector<2x384xf32> to vector<2x128xf32>
    %98 = vector.extract_strided_slice %92 {offsets = [0, 0], sizes = [2, 128], strides = [1, 1]} : vector<2x384xf32> to vector<2x128xf32>
    %99 = arith.addf %97, %98 : vector<2x128xf32>
    %100 = arith.negf %99 : vector<2x128xf32>
    %101 = math.exp %100 : vector<2x128xf32>
    %cst_32 = arith.constant 1.000000e+00 : f32
    %102 = vector.broadcast %cst_32 : f32 to vector<2x128xf32>
    %103 = arith.addf %102, %101 : vector<2x128xf32>
    %104 = arith.divf %102, %103 : vector<2x128xf32>
    %105 = vector.extract_strided_slice %96 {offsets = [0, 128], sizes = [2, 128], strides = [1, 1]} : vector<2x384xf32> to vector<2x128xf32>
    %106 = vector.extract_strided_slice %92 {offsets = [0, 128], sizes = [2, 128], strides = [1, 1]} : vector<2x384xf32> to vector<2x128xf32>
    %107 = arith.addf %105, %106 : vector<2x128xf32>
    %108 = arith.negf %107 : vector<2x128xf32>
    %109 = math.exp %108 : vector<2x128xf32>
    %cst_33 = arith.constant 1.000000e+00 : f32
    %110 = vector.broadcast %cst_33 : f32 to vector<2x128xf32>
    %111 = arith.addf %110, %109 : vector<2x128xf32>
    %112 = arith.divf %110, %111 : vector<2x128xf32>
    %113 = vector.extract_strided_slice %96 {offsets = [0, 256], sizes = [2, 128], strides = [1, 1]} : vector<2x384xf32> to vector<2x128xf32>
    %114 = vector.extract_strided_slice %92 {offsets = [0, 256], sizes = [2, 128], strides = [1, 1]} : vector<2x384xf32> to vector<2x128xf32>
    %115 = arith.addf %114, %13 : vector<2x128xf32>
    %116 = arith.mulf %104, %115 : vector<2x128xf32>
    %117 = arith.addf %113, %116 : vector<2x128xf32>
    %118 = math.tanh %117 : vector<2x128xf32>
    %cst_34 = arith.constant 1.000000e+00 : f32
    %119 = vector.broadcast %cst_34 : f32 to vector<2x128xf32>
    %120 = arith.subf %119, %112 : vector<2x128xf32>
    %121 = arith.mulf %120, %118 : vector<2x128xf32>
    %122 = arith.mulf %112, %85 : vector<2x128xf32>
    %123 = arith.addf %121, %122 : vector<2x128xf32>
    %124 = arith.truncf %123 : vector<2x128xf32> to vector<2x128xbf16>
    %125 = arith.index_cast %c2_i32 : i32 to index
    %c0_35 = arith.constant 0 : index
    %c256_36 = arith.constant 256 : index
    %126 = vector.load %arg10[%125, %c0_35, %c256_36] : memref<8x2x384xbf16, #tpu.memory_space<vmem>>, vector<1x2x128xbf16>
    %127 = vector.shape_cast %126 : vector<1x2x128xbf16> to vector<2x128xbf16>
    %128 = vector.shape_cast %124 : vector<2x128xbf16> to vector<1x2x128xbf16>
    tpu.vector_store %arg10[%125, %c0_35, %c256_36], %128 {strides = array<i32>} : memref<8x2x384xbf16, #tpu.memory_space<vmem>>, vector<1x2x128xbf16>,
    %c3_i32 = arith.constant 3 : i32
    %129 = arith.truncf %123 : vector<2x128xf32> to vector<2x128xbf16>
    %cst_37 = arith.constant dense<0.000000e+00> : vector<2x384xf32>
    %130 = tpu.matmul %129, %10, %cst_37 {dimension_numbers = #tpu.dot_dimension_numbers<[1], [0], [0], [1], [0, 0, 1, 1], [], []>} : vector<2x128xbf16>, vector<128x384xbf16>, vector<2x384xf32> -> vector<2x384xf32>
    %131 = arith.index_cast %c3_i32 : i32 to index
    %c0_38 = arith.constant 0 : index
    %c0_39 = arith.constant 0 : index
    %132 = vector.load %arg10[%131, %c0_38, %c0_39] : memref<8x2x384xbf16, #tpu.memory_space<vmem>>, vector<1x2x384xbf16>
    %133 = vector.shape_cast %132 : vector<1x2x384xbf16> to vector<2x384xbf16>
    %134 = arith.extf %133 : vector<2x384xbf16> to vector<2x384xf32>
    %135 = vector.extract_strided_slice %134 {offsets = [0, 0], sizes = [2, 128], strides = [1, 1]} : vector<2x384xf32> to vector<2x128xf32>
    %136 = vector.extract_strided_slice %130 {offsets = [0, 0], sizes = [2, 128], strides = [1, 1]} : vector<2x384xf32> to vector<2x128xf32>
    %137 = arith.addf %135, %136 : vector<2x128xf32>
    %138 = arith.negf %137 : vector<2x128xf32>
    %139 = math.exp %138 : vector<2x128xf32>
    %cst_40 = arith.constant 1.000000e+00 : f32
    %140 = vector.broadcast %cst_40 : f32 to vector<2x128xf32>
    %141 = arith.addf %140, %139 : vector<2x128xf32>
    %142 = arith.divf %140, %141 : vector<2x128xf32>
    %143 = vector.extract_strided_slice %134 {offsets = [0, 128], sizes = [2, 128], strides = [1, 1]} : vector<2x384xf32> to vector<2x128xf32>
    %144 = vector.extract_strided_slice %130 {offsets = [0, 128], sizes = [2, 128], strides = [1, 1]} : vector<2x384xf32> to vector<2x128xf32>
    %145 = arith.addf %143, %144 : vector<2x128xf32>
    %146 = arith.negf %145 : vector<2x128xf32>
    %147 = math.exp %146 : vector<2x128xf32>
    %cst_41 = arith.constant 1.000000e+00 : f32
    %148 = vector.broadcast %cst_41 : f32 to vector<2x128xf32>
    %149 = arith.addf %148, %147 : vector<2x128xf32>
    %150 = arith.divf %148, %149 : vector<2x128xf32>
    %151 = vector.extract_strided_slice %134 {offsets = [0, 256], sizes = [2, 128], strides = [1, 1]} : vector<2x384xf32> to vector<2x128xf32>
    %152 = vector.extract_strided_slice %130 {offsets = [0, 256], sizes = [2, 128], strides = [1, 1]} : vector<2x384xf32> to vector<2x128xf32>
    %153 = arith.addf %152, %13 : vector<2x128xf32>
    %154 = arith.mulf %142, %153 : vector<2x128xf32>
    %155 = arith.addf %151, %154 : vector<2x128xf32>
    %156 = math.tanh %155 : vector<2x128xf32>
    %cst_42 = arith.constant 1.000000e+00 : f32
    %157 = vector.broadcast %cst_42 : f32 to vector<2x128xf32>
    %158 = arith.subf %157, %150 : vector<2x128xf32>
    %159 = arith.mulf %158, %156 : vector<2x128xf32>
    %160 = arith.mulf %150, %123 : vector<2x128xf32>
    %161 = arith.addf %159, %160 : vector<2x128xf32>
    %162 = arith.truncf %161 : vector<2x128xf32> to vector<2x128xbf16>
    %163 = arith.index_cast %c3_i32 : i32 to index
    %c0_43 = arith.constant 0 : index
    %c256_44 = arith.constant 256 : index
    %164 = vector.load %arg10[%163, %c0_43, %c256_44] : memref<8x2x384xbf16, #tpu.memory_space<vmem>>, vector<1x2x128xbf16>
    %165 = vector.shape_cast %164 : vector<1x2x128xbf16> to vector<2x128xbf16>
    %166 = vector.shape_cast %162 : vector<2x128xbf16> to vector<1x2x128xbf16>
    tpu.vector_store %arg10[%163, %c0_43, %c256_44], %166 {strides = array<i32>} : memref<8x2x384xbf16, #tpu.memory_space<vmem>>, vector<1x2x128xbf16>,
    %c4_i32 = arith.constant 4 : i32
    %167 = arith.truncf %161 : vector<2x128xf32> to vector<2x128xbf16>
    %cst_45 = arith.constant dense<0.000000e+00> : vector<2x384xf32>
    %168 = tpu.matmul %167, %10, %cst_45 {dimension_numbers = #tpu.dot_dimension_numbers<[1], [0], [0], [1], [0, 0, 1, 1], [], []>} : vector<2x128xbf16>, vector<128x384xbf16>, vector<2x384xf32> -> vector<2x384xf32>
    %169 = arith.index_cast %c4_i32 : i32 to index
    %c0_46 = arith.constant 0 : index
    %c0_47 = arith.constant 0 : index
    %170 = vector.load %arg10[%169, %c0_46, %c0_47] : memref<8x2x384xbf16, #tpu.memory_space<vmem>>, vector<1x2x384xbf16>
    %171 = vector.shape_cast %170 : vector<1x2x384xbf16> to vector<2x384xbf16>
    %172 = arith.extf %171 : vector<2x384xbf16> to vector<2x384xf32>
    %173 = vector.extract_strided_slice %172 {offsets = [0, 0], sizes = [2, 128], strides = [1, 1]} : vector<2x384xf32> to vector<2x128xf32>
    %174 = vector.extract_strided_slice %168 {offsets = [0, 0], sizes = [2, 128], strides = [1, 1]} : vector<2x384xf32> to vector<2x128xf32>
    %175 = arith.addf %173, %174 : vector<2x128xf32>
    %176 = arith.negf %175 : vector<2x128xf32>
    %177 = math.exp %176 : vector<2x128xf32>
    %cst_48 = arith.constant 1.000000e+00 : f32
    %178 = vector.broadcast %cst_48 : f32 to vector<2x128xf32>
    %179 = arith.addf %178, %177 : vector<2x128xf32>
    %180 = arith.divf %178, %179 : vector<2x128xf32>
    %181 = vector.extract_strided_slice %172 {offsets = [0, 128], sizes = [2, 128], strides = [1, 1]} : vector<2x384xf32> to vector<2x128xf32>
    %182 = vector.extract_strided_slice %168 {offsets = [0, 128], sizes = [2, 128], strides = [1, 1]} : vector<2x384xf32> to vector<2x128xf32>
    %183 = arith.addf %181, %182 : vector<2x128xf32>
    %184 = arith.negf %183 : vector<2x128xf32>
    %185 = math.exp %184 : vector<2x128xf32>
    %cst_49 = arith.constant 1.000000e+00 : f32
    %186 = vector.broadcast %cst_49 : f32 to vector<2x128xf32>
    %187 = arith.addf %186, %185 : vector<2x128xf32>
    %188 = arith.divf %186, %187 : vector<2x128xf32>
    %189 = vector.extract_strided_slice %172 {offsets = [0, 256], sizes = [2, 128], strides = [1, 1]} : vector<2x384xf32> to vector<2x128xf32>
    %190 = vector.extract_strided_slice %168 {offsets = [0, 256], sizes = [2, 128], strides = [1, 1]} : vector<2x384xf32> to vector<2x128xf32>
    %191 = arith.addf %190, %13 : vector<2x128xf32>
    %192 = arith.mulf %180, %191 : vector<2x128xf32>
    %193 = arith.addf %189, %192 : vector<2x128xf32>
    %194 = math.tanh %193 : vector<2x128xf32>
    %cst_50 = arith.constant 1.000000e+00 : f32
    %195 = vector.broadcast %cst_50 : f32 to vector<2x128xf32>
    %196 = arith.subf %195, %188 : vector<2x128xf32>
    %197 = arith.mulf %196, %194 : vector<2x128xf32>
    %198 = arith.mulf %188, %161 : vector<2x128xf32>
    %199 = arith.addf %197, %198 : vector<2x128xf32>
    %200 = arith.truncf %199 : vector<2x128xf32> to vector<2x128xbf16>
    %201 = arith.index_cast %c4_i32 : i32 to index
    %c0_51 = arith.constant 0 : index
    %c256_52 = arith.constant 256 : index
    %202 = vector.load %arg10[%201, %c0_51, %c256_52] : memref<8x2x384xbf16, #tpu.memory_space<vmem>>, vector<1x2x128xbf16>
    %203 = vector.shape_cast %202 : vector<1x2x128xbf16> to vector<2x128xbf16>
    %204 = vector.shape_cast %200 : vector<2x128xbf16> to vector<1x2x128xbf16>
    tpu.vector_store %arg10[%201, %c0_51, %c256_52], %204 {strides = array<i32>} : memref<8x2x384xbf16, #tpu.memory_space<vmem>>, vector<1x2x128xbf16>,
    %c5_i32 = arith.constant 5 : i32
    %205 = arith.truncf %199 : vector<2x128xf32> to vector<2x128xbf16>
    %cst_53 = arith.constant dense<0.000000e+00> : vector<2x384xf32>
    %206 = tpu.matmul %205, %10, %cst_53 {dimension_numbers = #tpu.dot_dimension_numbers<[1], [0], [0], [1], [0, 0, 1, 1], [], []>} : vector<2x128xbf16>, vector<128x384xbf16>, vector<2x384xf32> -> vector<2x384xf32>
    %207 = arith.index_cast %c5_i32 : i32 to index
    %c0_54 = arith.constant 0 : index
    %c0_55 = arith.constant 0 : index
    %208 = vector.load %arg10[%207, %c0_54, %c0_55] : memref<8x2x384xbf16, #tpu.memory_space<vmem>>, vector<1x2x384xbf16>
    %209 = vector.shape_cast %208 : vector<1x2x384xbf16> to vector<2x384xbf16>
    %210 = arith.extf %209 : vector<2x384xbf16> to vector<2x384xf32>
    %211 = vector.extract_strided_slice %210 {offsets = [0, 0], sizes = [2, 128], strides = [1, 1]} : vector<2x384xf32> to vector<2x128xf32>
    %212 = vector.extract_strided_slice %206 {offsets = [0, 0], sizes = [2, 128], strides = [1, 1]} : vector<2x384xf32> to vector<2x128xf32>
    %213 = arith.addf %211, %212 : vector<2x128xf32>
    %214 = arith.negf %213 : vector<2x128xf32>
    %215 = math.exp %214 : vector<2x128xf32>
    %cst_56 = arith.constant 1.000000e+00 : f32
    %216 = vector.broadcast %cst_56 : f32 to vector<2x128xf32>
    %217 = arith.addf %216, %215 : vector<2x128xf32>
    %218 = arith.divf %216, %217 : vector<2x128xf32>
    %219 = vector.extract_strided_slice %210 {offsets = [0, 128], sizes = [2, 128], strides = [1, 1]} : vector<2x384xf32> to vector<2x128xf32>
    %220 = vector.extract_strided_slice %206 {offsets = [0, 128], sizes = [2, 128], strides = [1, 1]} : vector<2x384xf32> to vector<2x128xf32>
    %221 = arith.addf %219, %220 : vector<2x128xf32>
    %222 = arith.negf %221 : vector<2x128xf32>
    %223 = math.exp %222 : vector<2x128xf32>
    %cst_57 = arith.constant 1.000000e+00 : f32
    %224 = vector.broadcast %cst_57 : f32 to vector<2x128xf32>
    %225 = arith.addf %224, %223 : vector<2x128xf32>
    %226 = arith.divf %224, %225 : vector<2x128xf32>
    %227 = vector.extract_strided_slice %210 {offsets = [0, 256], sizes = [2, 128], strides = [1, 1]} : vector<2x384xf32> to vector<2x128xf32>
    %228 = vector.extract_strided_slice %206 {offsets = [0, 256], sizes = [2, 128], strides = [1, 1]} : vector<2x384xf32> to vector<2x128xf32>
    %229 = arith.addf %228, %13 : vector<2x128xf32>
    %230 = arith.mulf %218, %229 : vector<2x128xf32>
    %231 = arith.addf %227, %230 : vector<2x128xf32>
    %232 = math.tanh %231 : vector<2x128xf32>
    %cst_58 = arith.constant 1.000000e+00 : f32
    %233 = vector.broadcast %cst_58 : f32 to vector<2x128xf32>
    %234 = arith.subf %233, %226 : vector<2x128xf32>
    %235 = arith.mulf %234, %232 : vector<2x128xf32>
    %236 = arith.mulf %226, %199 : vector<2x128xf32>
    %237 = arith.addf %235, %236 : vector<2x128xf32>
    %238 = arith.truncf %237 : vector<2x128xf32> to vector<2x128xbf16>
    %239 = arith.index_cast %c5_i32 : i32 to index
    %c0_59 = arith.constant 0 : index
    %c256_60 = arith.constant 256 : index
    %240 = vector.load %arg10[%239, %c0_59, %c256_60] : memref<8x2x384xbf16, #tpu.memory_space<vmem>>, vector<1x2x128xbf16>
    %241 = vector.shape_cast %240 : vector<1x2x128xbf16> to vector<2x128xbf16>
    %242 = vector.shape_cast %238 : vector<2x128xbf16> to vector<1x2x128xbf16>
    tpu.vector_store %arg10[%239, %c0_59, %c256_60], %242 {strides = array<i32>} : memref<8x2x384xbf16, #tpu.memory_space<vmem>>, vector<1x2x128xbf16>,
    %c6_i32 = arith.constant 6 : i32
    %243 = arith.truncf %237 : vector<2x128xf32> to vector<2x128xbf16>
    %cst_61 = arith.constant dense<0.000000e+00> : vector<2x384xf32>
    %244 = tpu.matmul %243, %10, %cst_61 {dimension_numbers = #tpu.dot_dimension_numbers<[1], [0], [0], [1], [0, 0, 1, 1], [], []>} : vector<2x128xbf16>, vector<128x384xbf16>, vector<2x384xf32> -> vector<2x384xf32>
    %245 = arith.index_cast %c6_i32 : i32 to index
    %c0_62 = arith.constant 0 : index
    %c0_63 = arith.constant 0 : index
    %246 = vector.load %arg10[%245, %c0_62, %c0_63] : memref<8x2x384xbf16, #tpu.memory_space<vmem>>, vector<1x2x384xbf16>
    %247 = vector.shape_cast %246 : vector<1x2x384xbf16> to vector<2x384xbf16>
    %248 = arith.extf %247 : vector<2x384xbf16> to vector<2x384xf32>
    %249 = vector.extract_strided_slice %248 {offsets = [0, 0], sizes = [2, 128], strides = [1, 1]} : vector<2x384xf32> to vector<2x128xf32>
    %250 = vector.extract_strided_slice %244 {offsets = [0, 0], sizes = [2, 128], strides = [1, 1]} : vector<2x384xf32> to vector<2x128xf32>
    %251 = arith.addf %249, %250 : vector<2x128xf32>
    %252 = arith.negf %251 : vector<2x128xf32>
    %253 = math.exp %252 : vector<2x128xf32>
    %cst_64 = arith.constant 1.000000e+00 : f32
    %254 = vector.broadcast %cst_64 : f32 to vector<2x128xf32>
    %255 = arith.addf %254, %253 : vector<2x128xf32>
    %256 = arith.divf %254, %255 : vector<2x128xf32>
    %257 = vector.extract_strided_slice %248 {offsets = [0, 128], sizes = [2, 128], strides = [1, 1]} : vector<2x384xf32> to vector<2x128xf32>
    %258 = vector.extract_strided_slice %244 {offsets = [0, 128], sizes = [2, 128], strides = [1, 1]} : vector<2x384xf32> to vector<2x128xf32>
    %259 = arith.addf %257, %258 : vector<2x128xf32>
    %260 = arith.negf %259 : vector<2x128xf32>
    %261 = math.exp %260 : vector<2x128xf32>
    %cst_65 = arith.constant 1.000000e+00 : f32
    %262 = vector.broadcast %cst_65 : f32 to vector<2x128xf32>
    %263 = arith.addf %262, %261 : vector<2x128xf32>
    %264 = arith.divf %262, %263 : vector<2x128xf32>
    %265 = vector.extract_strided_slice %248 {offsets = [0, 256], sizes = [2, 128], strides = [1, 1]} : vector<2x384xf32> to vector<2x128xf32>
    %266 = vector.extract_strided_slice %244 {offsets = [0, 256], sizes = [2, 128], strides = [1, 1]} : vector<2x384xf32> to vector<2x128xf32>
    %267 = arith.addf %266, %13 : vector<2x128xf32>
    %268 = arith.mulf %256, %267 : vector<2x128xf32>
    %269 = arith.addf %265, %268 : vector<2x128xf32>
    %270 = math.tanh %269 : vector<2x128xf32>
    %cst_66 = arith.constant 1.000000e+00 : f32
    %271 = vector.broadcast %cst_66 : f32 to vector<2x128xf32>
    %272 = arith.subf %271, %264 : vector<2x128xf32>
    %273 = arith.mulf %272, %270 : vector<2x128xf32>
    %274 = arith.mulf %264, %237 : vector<2x128xf32>
    %275 = arith.addf %273, %274 : vector<2x128xf32>
    %276 = arith.truncf %275 : vector<2x128xf32> to vector<2x128xbf16>
    %277 = arith.index_cast %c6_i32 : i32 to index
    %c0_67 = arith.constant 0 : index
    %c256_68 = arith.constant 256 : index
    %278 = vector.load %arg10[%277, %c0_67, %c256_68] : memref<8x2x384xbf16, #tpu.memory_space<vmem>>, vector<1x2x128xbf16>
    %279 = vector.shape_cast %278 : vector<1x2x128xbf16> to vector<2x128xbf16>
    %280 = vector.shape_cast %276 : vector<2x128xbf16> to vector<1x2x128xbf16>
    tpu.vector_store %arg10[%277, %c0_67, %c256_68], %280 {strides = array<i32>} : memref<8x2x384xbf16, #tpu.memory_space<vmem>>, vector<1x2x128xbf16>,
    %c7_i32 = arith.constant 7 : i32
    %281 = arith.truncf %275 : vector<2x128xf32> to vector<2x128xbf16>
    %cst_69 = arith.constant dense<0.000000e+00> : vector<2x384xf32>
    %282 = tpu.matmul %281, %10, %cst_69 {dimension_numbers = #tpu.dot_dimension_numbers<[1], [0], [0], [1], [0, 0, 1, 1], [], []>} : vector<2x128xbf16>, vector<128x384xbf16>, vector<2x384xf32> -> vector<2x384xf32>
    %283 = arith.index_cast %c7_i32 : i32 to index
    %c0_70 = arith.constant 0 : index
    %c0_71 = arith.constant 0 : index
    %284 = vector.load %arg10[%283, %c0_70, %c0_71] : memref<8x2x384xbf16, #tpu.memory_space<vmem>>, vector<1x2x384xbf16>
    %285 = vector.shape_cast %284 : vector<1x2x384xbf16> to vector<2x384xbf16>
    %286 = arith.extf %285 : vector<2x384xbf16> to vector<2x384xf32>
    %287 = vector.extract_strided_slice %286 {offsets = [0, 0], sizes = [2, 128], strides = [1, 1]} : vector<2x384xf32> to vector<2x128xf32>
    %288 = vector.extract_strided_slice %282 {offsets = [0, 0], sizes = [2, 128], strides = [1, 1]} : vector<2x384xf32> to vector<2x128xf32>
    %289 = arith.addf %287, %288 : vector<2x128xf32>
    %290 = arith.negf %289 : vector<2x128xf32>
    %291 = math.exp %290 : vector<2x128xf32>
    %cst_72 = arith.constant 1.000000e+00 : f32
    %292 = vector.broadcast %cst_72 : f32 to vector<2x128xf32>
    %293 = arith.addf %292, %291 : vector<2x128xf32>
    %294 = arith.divf %292, %293 : vector<2x128xf32>
    %295 = vector.extract_strided_slice %286 {offsets = [0, 128], sizes = [2, 128], strides = [1, 1]} : vector<2x384xf32> to vector<2x128xf32>
    %296 = vector.extract_strided_slice %282 {offsets = [0, 128], sizes = [2, 128], strides = [1, 1]} : vector<2x384xf32> to vector<2x128xf32>
    %297 = arith.addf %295, %296 : vector<2x128xf32>
    %298 = arith.negf %297 : vector<2x128xf32>
    %299 = math.exp %298 : vector<2x128xf32>
    %cst_73 = arith.constant 1.000000e+00 : f32
    %300 = vector.broadcast %cst_73 : f32 to vector<2x128xf32>
    %301 = arith.addf %300, %299 : vector<2x128xf32>
    %302 = arith.divf %300, %301 : vector<2x128xf32>
    %303 = vector.extract_strided_slice %286 {offsets = [0, 256], sizes = [2, 128], strides = [1, 1]} : vector<2x384xf32> to vector<2x128xf32>
    %304 = vector.extract_strided_slice %282 {offsets = [0, 256], sizes = [2, 128], strides = [1, 1]} : vector<2x384xf32> to vector<2x128xf32>
    %305 = arith.addf %304, %13 : vector<2x128xf32>
    %306 = arith.mulf %294, %305 : vector<2x128xf32>
    %307 = arith.addf %303, %306 : vector<2x128xf32>
    %308 = math.tanh %307 : vector<2x128xf32>
    %cst_74 = arith.constant 1.000000e+00 : f32
    %309 = vector.broadcast %cst_74 : f32 to vector<2x128xf32>
    %310 = arith.subf %309, %302 : vector<2x128xf32>
    %311 = arith.mulf %310, %308 : vector<2x128xf32>
    %312 = arith.mulf %302, %275 : vector<2x128xf32>
    %313 = arith.addf %311, %312 : vector<2x128xf32>
    %314 = arith.truncf %313 : vector<2x128xf32> to vector<2x128xbf16>
    %315 = arith.index_cast %c7_i32 : i32 to index
    %c0_75 = arith.constant 0 : index
    %c256_76 = arith.constant 256 : index
    %316 = vector.load %arg10[%315, %c0_75, %c256_76] : memref<8x2x384xbf16, #tpu.memory_space<vmem>>, vector<1x2x128xbf16>
    %317 = vector.shape_cast %316 : vector<1x2x128xbf16> to vector<2x128xbf16>
    %318 = vector.shape_cast %314 : vector<2x128xbf16> to vector<1x2x128xbf16>
    tpu.vector_store %arg10[%315, %c0_75, %c256_76], %318 {strides = array<i32>} : memref<8x2x384xbf16, #tpu.memory_space<vmem>>, vector<1x2x128xbf16>,
    %c8_i32 = arith.constant 8 : i32
    %319 = tpu.iota {dimensions = array<i32: 0>} : vector<8x2x1xi32>
    %c0_77 = arith.constant 0 : index
    %c0_78 = arith.constant 0 : index
    %c0_79 = arith.constant 0 : index
    %320 = vector.load %arg2[%c0_77, %c0_78, %c0_79] : memref<1x2x1xi32, #tpu.memory_space<vmem>>, vector<1x2x1xi32>
    %321 = vector.broadcast %320 : vector<1x2x1xi32> to vector<8x2x1xi32>
    %322 = arith.cmpi slt, %319, %321 : vector<8x2x1xi32>
    %c0_80 = arith.constant 0 : index
    %c0_81 = arith.constant 0 : index
    %c256_82 = arith.constant 256 : index
    %323 = vector.load %arg10[%c0_80, %c0_81, %c256_82] : memref<8x2x384xbf16, #tpu.memory_space<vmem>>, vector<8x2x128xbf16>
    %c0_i32_83 = arith.constant 0 : i32
    %324 = arith.sitofp %c0_i32_83 : i32 to bf16
    %325 = vector.shape_cast %322 : vector<8x2x1xi1> to vector<8x2x1xi1>
    %326 = vector.broadcast %325 : vector<8x2x1xi1> to vector<8x2x128xi1>
    %327 = vector.broadcast %324 : bf16 to vector<8x2x128xbf16>
    %328 = arith.select %326, %323, %327 : vector<8x2x128xi1>, vector<8x2x128xbf16>
    %329 = vector.shape_cast %328 : vector<8x2x128xbf16> to vector<16x128xbf16>
    %c0_84 = arith.constant 0 : index
    %c0_85 = arith.constant 0 : index
    %330 = vector.load %arg7[%c0_84, %c0_85] : memref<128x128xbf16, #tpu.memory_space<vmem>>, vector<128x128xbf16>
    %cst_86 = arith.constant dense<0.000000e+00> : vector<16x128xf32>
    %331 = tpu.matmul %329, %330, %cst_86 {dimension_numbers = #tpu.dot_dimension_numbers<[1], [0], [0], [1], [0, 0, 1, 1], [], []>} : vector<16x128xbf16>, vector<128x128xbf16>, vector<16x128xf32> -> vector<16x128xf32>
    %c0_87 = arith.constant 0 : index
    %c0_88 = arith.constant 0 : index
    %332 = vector.load %arg8[%c0_87, %c0_88] : memref<1x128xf32, #tpu.memory_space<vmem>>, vector<1x128xf32>
    %333 = vector.broadcast %332 : vector<1x128xf32> to vector<16x128xf32>
    %334 = arith.addf %331, %333 : vector<16x128xf32>
    %335 = vector.shape_cast %334 : vector<16x128xf32> to vector<8x2x128xf32>
    %c0_89 = arith.constant 0 : index
    %c0_90 = arith.constant 0 : index
    %c0_91 = arith.constant 0 : index
    %336 = vector.load %arg9[%c0_89, %c0_90, %c0_91] : memref<8x2x128xf32, #tpu.memory_space<vmem>>, vector<8x2x128xf32>
    tpu.vector_store %arg9[%c0_89, %c0_90, %c0_91], %335 {strides = array<i32>} : memref<8x2x128xf32, #tpu.memory_space<vmem>>, vector<8x2x128xf32>,
    return
  }
  func.func @transform_0(%arg0: i32) -> (i32, i32, i32) {
    %c0_i32 = arith.constant 0 : i32
    %c0_i32_0 = arith.constant 0 : i32
    %c0_i32_1 = arith.constant 0 : i32
    return %c0_i32, %arg0, %c0_i32_0 : i32, i32, i32
  }
  func.func @transform_1(%arg0: i32) -> (i32, i32, i32) {
    %c0_i32 = arith.constant 0 : i32
    %c0_i32_0 = arith.constant 0 : i32
    %c0_i32_1 = arith.constant 0 : i32
    return %c0_i32, %arg0, %c0_i32_0 : i32, i32, i32
  }
  func.func @transform_2(%arg0: i32) -> (i32, i32) {
    %c0_i32 = arith.constant 0 : i32
    %c0_i32_0 = arith.constant 0 : i32
    %c0_i32_1 = arith.constant 0 : i32
    return %c0_i32, %c0_i32_0 : i32, i32
  }
  func.func @transform_3(%arg0: i32) -> (i32, i32) {
    %c0_i32 = arith.constant 0 : i32
    %c0_i32_0 = arith.constant 0 : i32
    %c0_i32_1 = arith.constant 0 : i32
    return %c0_i32, %c0_i32_0 : i32, i32
  }
  func.func @transform_4(%arg0: i32) -> (i32, i32) {
    %c0_i32 = arith.constant 0 : i32
    %c0_i32_0 = arith.constant 0 : i32
    %c0_i32_1 = arith.constant 0 : i32
    return %c0_i32, %c0_i32_0 : i32, i32
  }
  func.func @transform_5(%arg0: i32) -> (i32, i32) {
    %c0_i32 = arith.constant 0 : i32
    %c0_i32_0 = arith.constant 0 : i32
    %c0_i32_1 = arith.constant 0 : i32
    return %c0_i32, %c0_i32_0 : i32, i32
  }
  func.func @transform_6(%arg0: i32) -> (i32, i32) {
    %c0_i32 = arith.constant 0 : i32
    %c0_i32_0 = arith.constant 0 : i32
    %c0_i32_1 = arith.constant 0 : i32
    return %c0_i32, %c0_i32_0 : i32, i32
  }
  func.func @transform_7(%arg0: i32) -> (i32, i32) {
    %c0_i32 = arith.constant 0 : i32
    %c0_i32_0 = arith.constant 0 : i32
    %c0_i32_1 = arith.constant 0 : i32
    return %c0_i32, %c0_i32_0 : i32, i32
  }
  func.func @transform_8(%arg0: i32) -> (i32, i32, i32) {
    %c0_i32 = arith.constant 0 : i32
    %c0_i32_0 = arith.constant 0 : i32
    %c0_i32_1 = arith.constant 0 : i32
    return %c0_i32, %arg0, %c0_i32_0 : i32, i32, i32
  }
}

</mosaic_0001>

<llo_original>
// kernel: tpu_custom_call.1
$region0: #{tpu_custom_call.1}
  #allocation0 [shape = 'u32[]', space=smem, size = 0x4, offset = 0x4, fixed_abs, tag = 'smem constant byte address 0x4 - core index']
  #allocation1 [shape = 'u32[144,128]{1,0:T(1,128)}', space=vmem, size = 0x12000, scoped, tag = 'internal scratch']
  #allocation2 [shape = 'bf16[8,2,384]{2,1,0:T(2,128)(2,1)}', space=vmem, size = 0x3000, scoped, tag = 'scratch operand']
  %s0 = inlined_call_operand.hbm [shape: bf16[8,2,128], index: 0, kind: input, shape index: {}]
  %s1 = inlined_call_operand.vmem [shape: s32[1,2,1], index: 1, kind: input, shape index: {}]
  %s2 = inlined_call_operand.hbm [shape: bf16[128,384], index: 2, kind: input, shape index: {}]
  %s3 = inlined_call_operand.hbm [shape: bf16[128,384], index: 3, kind: input, shape index: {}]
  %s4 = inlined_call_operand.vmem [shape: f32[1,384], index: 4, kind: input, shape index: {}]
  %s5 = inlined_call_operand.vmem [shape: f32[1,128], index: 5, kind: input, shape index: {}]
  %s6 = inlined_call_operand.hbm [shape: bf16[128,128], index: 6, kind: input, shape index: {}]
  %s7 = inlined_call_operand.vmem [shape: f32[1,128], index: 7, kind: input, shape index: {}]
  %s8 = inlined_call_operand.hbm [shape: f32[8,2,128], index: 8, kind: output, shape index: {}]
  %s9 = sld [smem:[#allocation0]]
  $region58: #{tpu_custom_call.1} parent=0
    _
  %s11 = ssub.s32 1, %s9
  %s12 = scalar_select 0, %s11, %s9
  $region1: #{tpu_custom_call.1} parent=0
    #allocation3 [shape = 'u8[4096]{0}', space=vmem, size = 0x1000, scoped, tag = 'input window, operand 0, single buffered']
    #allocation4 [shape = 's32[1]{0}', space=sflag, size = 0x4, scoped, tag = 'scoped memory for tpu_custom_call.1']
    #allocation5 [shape = 's32[1]{0}', space=sflag, size = 0x4, scoped, tag = 'scoped memory for tpu_custom_call.1']
    #allocation6 [shape = 'u8[98304]{0}', space=vmem, size = 0x18000, scoped, tag = 'input window, operand 2, single buffered']
    #allocation7 [shape = 's32[1]{0}', space=sflag, size = 0x4, scoped, tag = 'scoped memory for tpu_custom_call.1']
    #allocation8 [shape = 'u8[98304]{0}', space=vmem, size = 0x18000, scoped, tag = 'input window, operand 3, single buffered']
    #allocation9 [shape = 'u8[32768]{0}', space=vmem, size = 0x8000, scoped, tag = 'input window, operand 6, single buffered']
    #allocation10 [shape = 's32[1]{0}', space=sflag, size = 0x4, scoped, tag = 'scoped memory for tpu_custom_call.1']
    #allocation11 [shape = 'u8[8192]{0}', space=vmem, size = 0x2000, scoped, tag = 'output window, operand 0, single buffered']
    %13 = vsyncpa [#allocation4], 0
    %14 = vsyncpa [#allocation7], 0
    %15 = vsyncpa [#allocation10], 0
    %16 = vsyncpa [#allocation5], 0
    // Predicated region
    $region2: #{tpu_custom_call.1} parent=1 // pred_check
      _
    $region3: #{tpu_custom_call.1} parent=1 // pred_check_branch
      %18 = sbr.rel (0) target = $region5
    $region4: #{tpu_custom_call.1} parent=1 // pred_region
      %s20 = ssub.s32 128, 128
      %21 = vsyncadd [#allocation4], %s20
      %s22 = sshll.u32 [#allocation3], 4
      %s23 = int_to_ptr.vmem [resolvable:$true] %s22
      %28 = dma.hbm_to_vmem [thread:$0]  %s0, 128, %s23, [#allocation4], 16, 16, 1
    $region5: #{tpu_custom_call.1} parent=1 // pred_fallthru
      _
    // Predicated region
    $region6: #{tpu_custom_call.1} parent=1 // pred_check
      _
    $region7: #{tpu_custom_call.1} parent=1 // pred_check_branch
      %30 = sbr.rel (0) target = $region9
    $region8: #{tpu_custom_call.1} parent=1 // pred_region
      _
    $region9: #{tpu_custom_call.1} parent=1 // pred_fallthru
      _
    // Predicated region
    $region10: #{tpu_custom_call.1} parent=1 // pred_check
      _
    $region11: #{tpu_custom_call.1} parent=1 // pred_check_branch
      %32 = sbr.rel (0) target = $region13
    $region12: #{tpu_custom_call.1} parent=1 // pred_region
      %s34 = ssub.s32 3072, 3072
      %35 = vsyncadd [#allocation7], %s34
      %s36 = sshll.u32 [#allocation6], 4
      %s37 = int_to_ptr.vmem [resolvable:$true] %s36
      %42 = dma.hbm_to_vmem [thread:$0]  %s2, 3072, %s37, [#allocation7], 192, 192, 12
    $region13: #{tpu_custom_call.1} parent=1 // pred_fallthru
      _
    // Predicated region
    $region14: #{tpu_custom_call.1} parent=1 // pred_check
      _
    $region15: #{tpu_custom_call.1} parent=1 // pred_check_branch
      %44 = sbr.rel (0) target = $region17
    $region16: #{tpu_custom_call.1} parent=1 // pred_region
      %s46 = ssub.s32 3072, 3072
      %47 = vsyncadd [#allocation7], %s46
      %s48 = sshll.u32 [#allocation8], 4
      %s49 = int_to_ptr.vmem [resolvable:$true] %s48
      %54 = dma.hbm_to_vmem [thread:$0]  %s3, 3072, %s49, [#allocation7], 192, 192, 12
    $region17: #{tpu_custom_call.1} parent=1 // pred_fallthru
      _
    // Predicated region
    $region18: #{tpu_custom_call.1} parent=1 // pred_check
      _
    $region19: #{tpu_custom_call.1} parent=1 // pred_check_branch
      %56 = sbr.rel (0) target = $region21
    $region20: #{tpu_custom_call.1} parent=1 // pred_region
      _
    $region21: #{tpu_custom_call.1} parent=1 // pred_fallthru
      _
    // Predicated region
    $region22: #{tpu_custom_call.1} parent=1 // pred_check
      _
    $region23: #{tpu_custom_call.1} parent=1 // pred_check_branch
      %58 = sbr.rel (0) target = $region25
    $region24: #{tpu_custom_call.1} parent=1 // pred_region
      _
    $region25: #{tpu_custom_call.1} parent=1 // pred_fallthru
      _
    // Predicated region
    $region26: #{tpu_custom_call.1} parent=1 // pred_check
      _
    $region27: #{tpu_custom_call.1} parent=1 // pred_check_branch
      %60 = sbr.rel (0) target = $region29
    $region28: #{tpu_custom_call.1} parent=1 // pred_region
      %s62 = ssub.s32 1024, 1024
      %63 = vsyncadd [#allocation10], %s62
      %s64 = sshll.u32 [#allocation9], 4
      %s65 = int_to_ptr.vmem [resolvable:$true] %s64
      %70 = dma.hbm_to_vmem [thread:$0]  %s6, 1024, %s65, [#allocation10], 64, 64, 4
    $region29: #{tpu_custom_call.1} parent=1 // pred_fallthru
      _
    // Predicated region
    $region30: #{tpu_custom_call.1} parent=1 // pred_check
      _
    $region31: #{tpu_custom_call.1} parent=1 // pred_check_branch
      %72 = sbr.rel (0) target = $region33
    $region32: #{tpu_custom_call.1} parent=1 // pred_region
      _
    $region33: #{tpu_custom_call.1} parent=1 // pred_fallthru
      _
    // Predicated region
    $region34: #{tpu_custom_call.1} parent=1 // pred_check
      _
    $region35: #{tpu_custom_call.1} parent=1 // pred_check_branch
      %74 = sbr.rel (0) target = $region37
    $region36: #{tpu_custom_call.1} parent=1 // pred_region
      %75 = dma.done [#allocation4], 128
    $region37: #{tpu_custom_call.1} parent=1 // pred_fallthru
      _
    // Predicated region
    $region38: #{tpu_custom_call.1} parent=1 // pred_check
      _
    $region39: #{tpu_custom_call.1} parent=1 // pred_check_branch
      %77 = sbr.rel (0) target = $region41
    $region40: #{tpu_custom_call.1} parent=1 // pred_region
      %78 = dma.done [#allocation7], 3072
    $region41: #{tpu_custom_call.1} parent=1 // pred_fallthru
      _
    // Predicated region
    $region42: #{tpu_custom_call.1} parent=1 // pred_check
      _
    $region43: #{tpu_custom_call.1} parent=1 // pred_check_branch
      %80 = sbr.rel (0) target = $region45
    $region44: #{tpu_custom_call.1} parent=1 // pred_region
      %81 = dma.done [#allocation7], 3072
    $region45: #{tpu_custom_call.1} parent=1 // pred_fallthru
      _
    // Predicated region
    $region46: #{tpu_custom_call.1} parent=1 // pred_check
      _
    $region47: #{tpu_custom_call.1} parent=1 // pred_check_branch
      %83 = sbr.rel (0) target = $region49
    $region48: #{tpu_custom_call.1} parent=1 // pred_region
      %84 = dma.done [#allocation10], 1024
    $region49: #{tpu_custom_call.1} parent=1 // pred_fallthru
      _
    %v87 = vld [vmem:[#allocation3] sm:$0x1]
    %v88 = vld [vmem:[#allocation3 + $0x1] sm:$0x1]
    %v89 = vld [vmem:[#allocation3 + $0x2] sm:$0x1]
    %v90 = vld [vmem:[#allocation3 + $0x3] sm:$0x1]
    %v91 = vld [vmem:[#allocation3 + $0x4] sm:$0x1]
    %v92 = vld [vmem:[#allocation3 + $0x5] sm:$0x1]
    %v93 = vld [vmem:[#allocation3 + $0x6] sm:$0x1]
    %v94 = vld [vmem:[#allocation3 + $0x7] sm:$0x1]
    %v95 = vld [vmem:[#allocation6] sm:$0xff]
    %v96 = vld [vmem:[#allocation6 + $0x8] sm:$0xf]
    %v97 = vld [vmem:[#allocation6 + $0xc] sm:$0xff]
    %v98 = vld [vmem:[#allocation6 + $0x14] sm:$0xf]
    %v99 = vld [vmem:[#allocation6 + $0x18] sm:$0xff]
    %v100 = vld [vmem:[#allocation6 + $0x20] sm:$0xf]
    %v101 = vld [vmem:[#allocation6 + $0x24] sm:$0xff]
    %v102 = vld [vmem:[#allocation6 + $0x2c] sm:$0xf]
    %v103 = vld [vmem:[#allocation6 + $0x30] sm:$0xff]
    %v104 = vld [vmem:[#allocation6 + $0x38] sm:$0xf]
    %v105 = vld [vmem:[#allocation6 + $0x3c] sm:$0xff]
    %v106 = vld [vmem:[#allocation6 + $0x44] sm:$0xf]
    %v107 = vld [vmem:[#allocation6 + $0x48] sm:$0xff]
    %v108 = vld [vmem:[#allocation6 + $0x50] sm:$0xf]
    %v109 = vld [vmem:[#allocation6 + $0x54] sm:$0xff]
    %v110 = vld [vmem:[#allocation6 + $0x5c] sm:$0xf]
    %v111 = vld [vmem:[#allocation6 + $0x60] sm:$0xff]
    %v112 = vld [vmem:[#allocation6 + $0x68] sm:$0xf]
    %v113 = vld [vmem:[#allocation6 + $0x6c] sm:$0xff]
    %v114 = vld [vmem:[#allocation6 + $0x74] sm:$0xf]
    %v115 = vld [vmem:[#allocation6 + $0x78] sm:$0xff]
    %v116 = vld [vmem:[#allocation6 + $0x80] sm:$0xf]
    %v117 = vld [vmem:[#allocation6 + $0x84] sm:$0xff]
    %v118 = vld [vmem:[#allocation6 + $0x8c] sm:$0xf]
    %v119 = vld [vmem:[#allocation6 + $0x90] sm:$0xff]
    %v120 = vld [vmem:[#allocation6 + $0x98] sm:$0xf]
    %v121 = vld [vmem:[#allocation6 + $0x9c] sm:$0xff]
    %v122 = vld [vmem:[#allocation6 + $0xa4] sm:$0xf]
    %v123 = vld [vmem:[#allocation6 + $0xa8] sm:$0xff]
    %v124 = vld [vmem:[#allocation6 + $0xb0] sm:$0xf]
    %v125 = vld [vmem:[#allocation6 + $0xb4] sm:$0xff]
    %v126 = vld [vmem:[#allocation6 + $0xbc] sm:$0xf]
    %v127 = vld [vmem:[%s4] sm:$0x7]
    %v129 = vlaneseq
    %v130 = vshrl.u32 %v129, 7
    %v131 = vsub.s32 0, %v130
    %v132 = vrot.slane %v127, %v131
    %v133 = vlaneseq
    %v134 = vshrl.u32 %v133, 7
    %v135 = vsub.s32 1, %v134
    %v136 = vrot.slane %v127, %v135
    %v137 = vlaneseq
    %v138 = vshrl.u32 %v137, 7
    %v139 = vsub.s32 2, %v138
    %v140 = vrot.slane %v127, %v139
    %v152 = vcombine.low %v87, %v88
    %v153 = vcombine.low %v89, %v90
    %v154 = vcombine.low %v91, %v92
    %v155 = vcombine.low %v93, %v94
    %v157 = vunpack.c.l.s4 1966171168
    %v158 = vunpack.c.0.s8 %v157
    %v159 = vlaneseq
    %v160 = vshrl.u32 %v159, 7
    %v161 = vsub.s32 %v158, %v160
    %v162 = vrot.slane %v152, %v161
    %v164 = vunpack.c.l.s4 1966171168
    %v165 = vunpack.c.0.s8 %v164
    %v166 = vlaneseq
    %v167 = vshrl.u32 %v166, 7
    %v168 = vsub.s32 %v165, %v167
    %v169 = vrot.slane %v153, %v168
    %v171 = vunpack.c.l.s4 1966171168
    %v172 = vunpack.c.0.s8 %v171
    %v173 = vlaneseq
    %v174 = vshrl.u32 %v173, 7
    %v175 = vsub.s32 %v172, %v174
    %v176 = vrot.slane %v154, %v175
    %v178 = vunpack.c.l.s4 1966171168
    %v179 = vunpack.c.0.s8 %v178
    %v180 = vlaneseq
    %v181 = vshrl.u32 %v180, 7
    %v182 = vsub.s32 %v179, %v181
    %v183 = vrot.slane %v155, %v182
    %v184 = vcombine.low %v162, %v169
    %v185 = vcombine.low %v176, %v183
    %v187 = vunpack.c.l.s4 1966171168
    %v188 = vunpack.c.0.s8 %v187
    %v189 = vlaneseq
    %v190 = vshrl.u32 %v189, 7
    %v191 = vsub.s32 %v188, %v190
    %v192 = vrot.slane %v184, %v191
    %v194 = vunpack.c.l.s4 1966171168
    %v195 = vunpack.c.0.s8 %v194
    %v196 = vlaneseq
    %v197 = vshrl.u32 %v196, 7
    %v198 = vsub.s32 %v195, %v197
    %v199 = vrot.slane %v185, %v198
    %v200 = vcombine.low %v192, %v199
    %v234 = vunpack.c.l.b16 %v95
    %v235 = vunpack.c.h.b16 %v95
    %v236 = vunpack.c.l.b16 %v96
    %v237 = vunpack.c.l.b16 %v97
    %v238 = vunpack.c.h.b16 %v97
    %v239 = vunpack.c.l.b16 %v98
    %v240 = vunpack.c.l.b16 %v99
    %v241 = vunpack.c.h.b16 %v99
    %v242 = vunpack.c.l.b16 %v100
    %v243 = vunpack.c.l.b16 %v101
    %v244 = vunpack.c.h.b16 %v101
    %v245 = vunpack.c.l.b16 %v102
    %v246 = vunpack.c.l.b16 %v103
    %v247 = vunpack.c.h.b16 %v103
    %v248 = vunpack.c.l.b16 %v104
    %v249 = vunpack.c.l.b16 %v105
    %v250 = vunpack.c.h.b16 %v105
    %v251 = vunpack.c.l.b16 %v106
    %v252 = vunpack.c.l.b16 %v107
    %v253 = vunpack.c.h.b16 %v107
    %v254 = vunpack.c.l.b16 %v108
    %v255 = vunpack.c.l.b16 %v109
    %v256 = vunpack.c.h.b16 %v109
    %v257 = vunpack.c.l.b16 %v110
    %v258 = vunpack.c.l.b16 %v111
    %v259 = vunpack.c.h.b16 %v111
    %v260 = vunpack.c.l.b16 %v112
    %v261 = vunpack.c.l.b16 %v113
    %v262 = vunpack.c.h.b16 %v113
    %v263 = vunpack.c.l.b16 %v114
    %v264 = vunpack.c.l.b16 %v115
    %v265 = vunpack.c.h.b16 %v115
    %v266 = vunpack.c.l.b16 %v116
    %v267 = vunpack.c.l.b16 %v117
    %v268 = vunpack.c.h.b16 %v117
    %v269 = vunpack.c.l.b16 %v118
    %v270 = vunpack.c.l.b16 %v119
    %v271 = vunpack.c.h.b16 %v119
    %v272 = vunpack.c.l.b16 %v120
    %v273 = vunpack.c.l.b16 %v121
    %v274 = vunpack.c.h.b16 %v121
    %v275 = vunpack.c.l.b16 %v122
    %v276 = vunpack.c.l.b16 %v123
    %v277 = vunpack.c.h.b16 %v123
    %v278 = vunpack.c.l.b16 %v124
    %v279 = vunpack.c.l.b16 %v125
    %v280 = vunpack.c.h.b16 %v125
    %v281 = vunpack.c.l.b16 %v126
    %v282 = vpack.c.b16 %v237, %v234
    %v283 = vpack.c.b16 %v238, %v235
    %v284 = vpack.c.b16 %v239, %v236
    %v285 = vpack.c.b16 %v243, %v240
    %v286 = vpack.c.b16 %v244, %v241
    %v287 = vpack.c.b16 %v245, %v242
    %v288 = vpack.c.b16 %v249, %v246
    %v289 = vpack.c.b16 %v250, %v247
    %v290 = vpack.c.b16 %v251, %v248
    %v291 = vpack.c.b16 %v255, %v252
    %v292 = vpack.c.b16 %v256, %v253
    %v293 = vpack.c.b16 %v257, %v254
    %v294 = vpack.c.b16 %v261, %v258
    %v295 = vpack.c.b16 %v262, %v259
    %v296 = vpack.c.b16 %v263, %v260
    %v297 = vpack.c.b16 %v267, %v264
    %v298 = vpack.c.b16 %v268, %v265
    %v299 = vpack.c.b16 %v269, %v266
    %v300 = vpack.c.b16 %v273, %v270
    %v301 = vpack.c.b16 %v274, %v271
    %v302 = vpack.c.b16 %v275, %v272
    %v303 = vpack.c.b16 %v279, %v276
    %v304 = vpack.c.b16 %v280, %v277
    %v305 = vpack.c.b16 %v281, %v278
    %330 = vmatprep.subr.bf16.mxu0 %v304
    %331 = vmatpush1.bf16.msra.mxu0 %v303
    %332 = vmatprep.subr.bf16.mxu0 %v301
    %333 = vmatpush1.bf16.msra.mxu0 %v300
    %334 = vmatprep.subr.bf16.mxu0 %v298
    %335 = vmatpush1.bf16.msra.mxu0 %v297
    %336 = vmatprep.subr.bf16.mxu0 %v295
    %337 = vmatpush1.bf16.msra.mxu0 %v294
    %338 = vmatprep.subr.bf16.mxu0 %v292
    %339 = vmatpush1.bf16.msra.mxu0 %v291
    %340 = vmatprep.subr.bf16.mxu0 %v289
    %341 = vmatpush1.bf16.msra.mxu0 %v288
    %342 = vmatprep.subr.bf16.mxu0 %v286
    %343 = vmatpush1.bf16.msra.mxu0 %v285
    %344 = vmatprep.subr.bf16.mxu0 %v283
    %345 = vmatpush1.bf16.msra.mxu0 %v282
    %346 = vmatprep.subr.bf16.mxu0 0
    %347 = vmatpush2.bf16.msra.mxu0 0
    %348 = vmatprep.subr.bf16.mxu0 0
    %349 = vmatpush2.bf16.msra.mxu0 0
    %350 = vmatprep.subr.bf16.mxu0 0
    %351 = vmatpush2.bf16.msra.mxu0 0
    %352 = vmatprep.subr.bf16.mxu0 0
    %353 = vmatpush2.bf16.msra.mxu0 0
    %354 = vmatprep.subr.bf16.mxu0 0
    %355 = vmatpush2.bf16.msra.mxu0 0
    %356 = vmatprep.subr.bf16.mxu0 0
    %357 = vmatpush2.bf16.msra.mxu0 0
    %358 = vmatprep.subr.bf16.mxu0 0
    %359 = vmatpush2.bf16.msra.mxu0 0
    %360 = vmatprep.subr.bf16.mxu0 0
    %361 = vmatpush2.bf16.msra.mxu0 0
    %362 = vmatprep.mubr.bf16.mxu0 0
    %363 = vmatmul.mubr.bf16.gmra.mxu0 %v200
    %v364 = vpop.f32.mrf.mxu0
    %v365 = vadd.f32 %v132, %v364
    %v366 = vpop.f32.mrf.mxu0
    %v367 = vadd.f32 %v136, %v366
    %v368 = vpop.f32.mrf.mxu0
    %v369 = vadd.f32 %v132, %v368
    %v370 = vpop.f32.mrf.mxu0
    %v371 = vadd.f32 %v136, %v370
    %372 = vdwg.mxu0
    %373 = vmatprep.subr.bf16.mxu0 0
    %374 = vmatpush1.bf16.msra.mxu0 %v305
    %375 = vmatprep.subr.bf16.mxu0 0
    %376 = vmatpush1.bf16.msra.mxu0 %v302
    %377 = vmatprep.subr.bf16.mxu0 0
    %378 = vmatpush1.bf16.msra.mxu0 %v299
    %379 = vmatprep.subr.bf16.mxu0 0
    %380 = vmatpush1.bf16.msra.mxu0 %v296
    %381 = vmatprep.subr.bf16.mxu0 0
    %382 = vmatpush1.bf16.msra.mxu0 %v293
    %383 = vmatprep.subr.bf16.mxu0 0
    %384 = vmatpush1.bf16.msra.mxu0 %v290
    %385 = vmatprep.subr.bf16.mxu0 0
    %386 = vmatpush1.bf16.msra.mxu0 %v287
    %387 = vmatprep.subr.bf16.mxu0 0
    %388 = vmatpush1.bf16.msra.mxu0 %v284
    %389 = vmatprep.subr.bf16.mxu0 0
    %390 = vmatpush2.bf16.msra.mxu0 0
    %391 = vmatprep.subr.bf16.mxu0 0
    %392 = vmatpush2.bf16.msra.mxu0 0
    %393 = vmatprep.subr.bf16.mxu0 0
    %394 = vmatpush2.bf16.msra.mxu0 0
    %395 = vmatprep.subr.bf16.mxu0 0
    %396 = vmatpush2.bf16.msra.mxu0 0
    %397 = vmatprep.subr.bf16.mxu0 0
    %398 = vmatpush2.bf16.msra.mxu0 0
    %399 = vmatprep.subr.bf16.mxu0 0
    %400 = vmatpush2.bf16.msra.mxu0 0
    %401 = vmatprep.subr.bf16.mxu0 0
    %402 = vmatpush2.bf16.msra.mxu0 0
    %403 = vmatprep.subr.bf16.mxu0 0
    %404 = vmatpush2.bf16.msra.mxu0 0
    %405 = vmatprep.mubr.bf16.mxu0 0
    %406 = vmatmul.mubr.bf16.gmra.mxu0 %v200
    %v407 = vpop.f32.mrf.mxu0
    %v408 = vadd.f32 %v140, %v407
    %v409 = vpop.f32.mrf.mxu0
    %v410 = vpop.f32.mrf.mxu0
    %v411 = vadd.f32 %v140, %v410
    %v412 = vpop.f32.mrf.mxu0
    %413 = vdwg.mxu0
    %v414 = vpack.c.bf16 %v369, %v365
    %v415 = vpack.c.bf16 %v371, %v367
    %v416 = vpack.c.bf16 %v411, %v408
    %v420 = vcombine.low %v414, %v415
    %v421 = vcombine.high %v414, %v415
    %v422 = vcombine.high %v416, %v416
    %v424 = vunpack.c.l.s4 1966171168
    %v425 = vunpack.c.0.s8 %v424
    %v426 = vlaneseq
    %v427 = vshrl.u32 %v426, 7
    %v428 = vsub.s32 %v425, %v427
    %v429 = vrot.slane %v420, %v428
    %v431 = vunpack.c.l.s4 1966171168
    %v432 = vunpack.c.0.s8 %v431
    %v433 = vlaneseq
    %v434 = vshrl.u32 %v433, 7
    %v435 = vsub.s32 %v432, %v434
    %v436 = vrot.slane %v421, %v435
    %v438 = vunpack.c.l.s4 1966171168
    %v439 = vunpack.c.0.s8 %v438
    %v440 = vlaneseq
    %v441 = vshrl.u32 %v440, 7
    %v442 = vsub.s32 %v439, %v441
    %v443 = vrot.slane %v416, %v442
    %v445 = vunpack.c.l.s4 1966171168
    %v446 = vunpack.c.0.s8 %v445
    %v447 = vlaneseq
    %v448 = vshrl.u32 %v447, 7
    %v449 = vsub.s32 %v446, %v448
    %v450 = vrot.slane %v422, %v449
    %v451 = vcombine.low %v429, %v443
    %v452 = vcombine.high %v429, %v443
    %v453 = vcombine.low %v436, %v450
    %v454 = vcombine.high %v436, %v450
    %v456 = vunpack.c.l.s4 1966171168
    %v457 = vunpack.c.0.s8 %v456
    %v458 = vlaneseq
    %v459 = vshrl.u32 %v458, 7
    %v460 = vsub.s32 %v457, %v459
    %v461 = vrot.slane %v451, %v460
    %v463 = vunpack.c.l.s4 1966171168
    %v464 = vunpack.c.0.s8 %v463
    %v465 = vlaneseq
    %v466 = vshrl.u32 %v465, 7
    %v467 = vsub.s32 %v464, %v466
    %v468 = vrot.slane %v453, %v467
    %v470 = vunpack.c.l.s4 1966171168
    %v471 = vunpack.c.0.s8 %v470
    %v472 = vlaneseq
    %v473 = vshrl.u32 %v472, 7
    %v474 = vsub.s32 %v471, %v473
    %v475 = vrot.slane %v452, %v474
    %v477 = vunpack.c.l.s4 1966171168
    %v478 = vunpack.c.0.s8 %v477
    %v479 = vlaneseq
    %v480 = vshrl.u32 %v479, 7
    %v481 = vsub.s32 %v478, %v480
    %v482 = vrot.slane %v454, %v481
    %v483 = vcombine.high %v461, %v461
    %v484 = vcombine.high %v468, %v468
    %v485 = vcombine.high %v475, %v475
    %v486 = vcombine.high %v482, %v482
    %495 = vst [vmem:[#allocation2] sm:$0x7] %v461
    %496 = vst [vmem:[#allocation2 + $0x3] sm:$0x7] %v475
    %497 = vst [vmem:[#allocation2 + $0x6] sm:$0x7] %v483
    %498 = vst [vmem:[#allocation2 + $0x9] sm:$0x7] %v485
    %499 = vst [vmem:[#allocation2 + $0xc] sm:$0x7] %v468
    %500 = vst [vmem:[#allocation2 + $0xf] sm:$0x7] %v482
    %501 = vst [vmem:[#allocation2 + $0x12] sm:$0x7] %v484
    %502 = vst [vmem:[#allocation2 + $0x15] sm:$0x7] %v486
    %v503 = vld [vmem:[#allocation8] sm:$0xff]
    %v504 = vld [vmem:[#allocation8 + $0x8] sm:$0xf]
    %v505 = vld [vmem:[#allocation8 + $0xc] sm:$0xff]
    %v506 = vld [vmem:[#allocation8 + $0x14] sm:$0xf]
    %v507 = vld [vmem:[#allocation8 + $0x18] sm:$0xff]
    %v508 = vld [vmem:[#allocation8 + $0x20] sm:$0xf]
    %v509 = vld [vmem:[#allocation8 + $0x24] sm:$0xff]
    %v510 = vld [vmem:[#allocation8 + $0x2c] sm:$0xf]
    %v511 = vld [vmem:[#allocation8 + $0x30] sm:$0xff]
    %v512 = vld [vmem:[#allocation8 + $0x38] sm:$0xf]
    %v513 = vld [vmem:[#allocation8 + $0x3c] sm:$0xff]
    %v514 = vld [vmem:[#allocation8 + $0x44] sm:$0xf]
    %v515 = vld [vmem:[#allocation8 + $0x48] sm:$0xff]
    %v516 = vld [vmem:[#allocation8 + $0x50] sm:$0xf]
    %v517 = vld [vmem:[#allocation8 + $0x54] sm:$0xff]
    %v518 = vld [vmem:[#allocation8 + $0x5c] sm:$0xf]
    %v519 = vld [vmem:[#allocation8 + $0x60] sm:$0xff]
    %v520 = vld [vmem:[#allocation8 + $0x68] sm:$0xf]
    %v521 = vld [vmem:[#allocation8 + $0x6c] sm:$0xff]
    %v522 = vld [vmem:[#allocation8 + $0x74] sm:$0xf]
    %v523 = vld [vmem:[#allocation8 + $0x78] sm:$0xff]
    %v524 = vld [vmem:[#allocation8 + $0x80] sm:$0xf]
    %v525 = vld [vmem:[#allocation8 + $0x84] sm:$0xff]
    %v526 = vld [vmem:[#allocation8 + $0x8c] sm:$0xf]
    %v527 = vld [vmem:[#allocation8 + $0x90] sm:$0xff]
    %v528 = vld [vmem:[#allocation8 + $0x98] sm:$0xf]
    %v529 = vld [vmem:[#allocation8 + $0x9c] sm:$0xff]
    %v530 = vld [vmem:[#allocation8 + $0xa4] sm:$0xf]
    %v531 = vld [vmem:[#allocation8 + $0xa8] sm:$0xff]
    %v532 = vld [vmem:[#allocation8 + $0xb0] sm:$0xf]
    %v533 = vld [vmem:[#allocation8 + $0xb4] sm:$0xff]
    %v534 = vld [vmem:[#allocation8 + $0xbc] sm:$0xf]
    %v535 = vld [vmem:[%s5] sm:$0x1]
    %v537 = vlaneseq
    %v538 = vshrl.u32 %v537, 7
    %v539 = vsub.s32 0, %v538
    %v540 = vrot.slane %v535, %v539
    %v574 = vunpack.c.l.b16 %v503
    %v575 = vunpack.c.h.b16 %v503
    %v576 = vunpack.c.l.b16 %v504
    %v577 = vunpack.c.l.b16 %v505
    %v578 = vunpack.c.h.b16 %v505
    %v579 = vunpack.c.l.b16 %v506
    %v580 = vunpack.c.l.b16 %v507
    %v581 = vunpack.c.h.b16 %v507
    %v582 = vunpack.c.l.b16 %v508
    %v583 = vunpack.c.l.b16 %v509
    %v584 = vunpack.c.h.b16 %v509
    %v585 = vunpack.c.l.b16 %v510
    %v586 = vunpack.c.l.b16 %v511
    %v587 = vunpack.c.h.b16 %v511
    %v588 = vunpack.c.l.b16 %v512
    %v589 = vunpack.c.l.b16 %v513
    %v590 = vunpack.c.h.b16 %v513
    %v591 = vunpack.c.l.b16 %v514
    %v592 = vunpack.c.l.b16 %v515
    %v593 = vunpack.c.h.b16 %v515
    %v594 = vunpack.c.l.b16 %v516
    %v595 = vunpack.c.l.b16 %v517
    %v596 = vunpack.c.h.b16 %v517
    %v597 = vunpack.c.l.b16 %v518
    %v598 = vunpack.c.l.b16 %v519
    %v599 = vunpack.c.h.b16 %v519
    %v600 = vunpack.c.l.b16 %v520
    %v601 = vunpack.c.l.b16 %v521
    %v602 = vunpack.c.h.b16 %v521
    %v603 = vunpack.c.l.b16 %v522
    %v604 = vunpack.c.l.b16 %v523
    %v605 = vunpack.c.h.b16 %v523
    %v606 = vunpack.c.l.b16 %v524
    %v607 = vunpack.c.l.b16 %v525
    %v608 = vunpack.c.h.b16 %v525
    %v609 = vunpack.c.l.b16 %v526
    %v610 = vunpack.c.l.b16 %v527
    %v611 = vunpack.c.h.b16 %v527
    %v612 = vunpack.c.l.b16 %v528
    %v613 = vunpack.c.l.b16 %v529
    %v614 = vunpack.c.h.b16 %v529
    %v615 = vunpack.c.l.b16 %v530
    %v616 = vunpack.c.l.b16 %v531
    %v617 = vunpack.c.h.b16 %v531
    %v618 = vunpack.c.l.b16 %v532
    %v619 = vunpack.c.l.b16 %v533
    %v620 = vunpack.c.h.b16 %v533
    %v621 = vunpack.c.l.b16 %v534
    %v622 = vpack.c.b16 %v577, %v574
    %v623 = vpack.c.b16 %v578, %v575
    %v624 = vpack.c.b16 %v579, %v576
    %v625 = vpack.c.b16 %v583, %v580
    %v626 = vpack.c.b16 %v584, %v581
    %v627 = vpack.c.b16 %v585, %v582
    %v628 = vpack.c.b16 %v589, %v586
    %v629 = vpack.c.b16 %v590, %v587
    %v630 = vpack.c.b16 %v591, %v588
    %v631 = vpack.c.b16 %v595, %v592
    %v632 = vpack.c.b16 %v596, %v593
    %v633 = vpack.c.b16 %v597, %v594
    %v634 = vpack.c.b16 %v601, %v598
    %v635 = vpack.c.b16 %v602, %v599
    %v636 = vpack.c.b16 %v603, %v600
    %v637 = vpack.c.b16 %v607, %v604
    %v638 = vpack.c.b16 %v608, %v605
    %v639 = vpack.c.b16 %v609, %v606
    %v640 = vpack.c.b16 %v613, %v610
    %v641 = vpack.c.b16 %v614, %v611
    %v642 = vpack.c.b16 %v615, %v612
    %v643 = vpack.c.b16 %v619, %v616
    %v644 = vpack.c.b16 %v620, %v617
    %v645 = vpack.c.b16 %v621, %v618
    %670 = vmatprep.subr.bf16.mxu0 %v644
    %671 = vmatpush1.bf16.msra.mxu0 %v643
    %672 = vmatprep.subr.bf16.mxu0 %v641
    %673 = vmatpush1.bf16.msra.mxu0 %v640
    %674 = vmatprep.subr.bf16.mxu0 %v638
    %675 = vmatpush1.bf16.msra.mxu0 %v637
    %676 = vmatprep.subr.bf16.mxu0 %v635
    %677 = vmatpush1.bf16.msra.mxu0 %v634
    %678 = vmatprep.subr.bf16.mxu0 %v632
    %679 = vmatpush1.bf16.msra.mxu0 %v631
    %680 = vmatprep.subr.bf16.mxu0 %v629
    %681 = vmatpush1.bf16.msra.mxu0 %v628
    %682 = vmatprep.subr.bf16.mxu0 %v626
    %683 = vmatpush1.bf16.msra.mxu0 %v625
    %684 = vmatprep.subr.bf16.mxu0 %v623
    %685 = vmatpush1.bf16.msra.mxu0 %v622
    %686 = vmatprep.subr.bf16.mxu0 0
    %687 = vmatpush2.bf16.msra.mxu0 0
    %688 = vmatprep.subr.bf16.mxu0 0
    %689 = vmatpush2.bf16.msra.mxu0 0
    %690 = vmatprep.subr.bf16.mxu0 0
    %691 = vmatpush2.bf16.msra.mxu0 0
    %692 = vmatprep.subr.bf16.mxu0 0
    %693 = vmatpush2.bf16.msra.mxu0 0
    %694 = vmatprep.subr.bf16.mxu0 0
    %695 = vmatpush2.bf16.msra.mxu0 0
    %696 = vmatprep.subr.bf16.mxu0 0
    %697 = vmatpush2.bf16.msra.mxu0 0
    %698 = vmatprep.subr.bf16.mxu0 0
    %699 = vmatpush2.bf16.msra.mxu0 0
    %700 = vmatprep.subr.bf16.mxu0 0
    %701 = vmatpush2.bf16.msra.mxu0 0
    %702 = vmatprep.mubr.bf16.mxu0 0
    %703 = vmatmul.mubr.bf16.gmra.mxu0 0
    %v704 = vpop.f32.mrf.mxu0
    %v705 = vadd.f32 0.0, %v704
    %v706 = vpop.f32.mrf.mxu0
    %v707 = vadd.f32 0.0, %v706
    %v708 = vpop.f32.mrf.mxu0
    %v709 = vpop.f32.mrf.mxu0
    %710 = vdwg.mxu0
    %711 = vmatprep.subr.bf16.mxu0 0
    %712 = vmatpush1.bf16.msra.mxu0 %v645
    %713 = vmatprep.subr.bf16.mxu0 0
    %714 = vmatpush1.bf16.msra.mxu0 %v642
    %715 = vmatprep.subr.bf16.mxu0 0
    %716 = vmatpush1.bf16.msra.mxu0 %v639
    %717 = vmatprep.subr.bf16.mxu0 0
    %718 = vmatpush1.bf16.msra.mxu0 %v636
    %719 = vmatprep.subr.bf16.mxu0 0
    %720 = vmatpush1.bf16.msra.mxu0 %v633
    %721 = vmatprep.subr.bf16.mxu0 0
    %722 = vmatpush1.bf16.msra.mxu0 %v630
    %723 = vmatprep.subr.bf16.mxu0 0
    %724 = vmatpush1.bf16.msra.mxu0 %v627
    %725 = vmatprep.subr.bf16.mxu0 0
    %726 = vmatpush1.bf16.msra.mxu0 %v624
    %727 = vmatprep.subr.bf16.mxu0 0
    %728 = vmatpush2.bf16.msra.mxu0 0
    %729 = vmatprep.subr.bf16.mxu0 0
    %730 = vmatpush2.bf16.msra.mxu0 0
    %731 = vmatprep.subr.bf16.mxu0 0
    %732 = vmatpush2.bf16.msra.mxu0 0
    %733 = vmatprep.subr.bf16.mxu0 0
    %734 = vmatpush2.bf16.msra.mxu0 0
    %735 = vmatprep.subr.bf16.mxu0 0
    %736 = vmatpush2.bf16.msra.mxu0 0
    %737 = vmatprep.subr.bf16.mxu0 0
    %738 = vmatpush2.bf16.msra.mxu0 0
    %739 = vmatprep.subr.bf16.mxu0 0
    %740 = vmatpush2.bf16.msra.mxu0 0
    %741 = vmatprep.subr.bf16.mxu0 0
    %742 = vmatpush2.bf16.msra.mxu0 0
    %743 = vmatprep.mubr.bf16.mxu0 0
    %744 = vmatmul.mubr.bf16.gmra.mxu0 0
    %v745 = vpop.f32.mrf.mxu0
    %v746 = vadd.f32 0.0, %v745
    %v747 = vpop.f32.mrf.mxu0
    %v748 = vpop.f32.mrf.mxu0
    %v749 = vpop.f32.mrf.mxu0
    %750 = vdwg.mxu0
    %v751 = vld [vmem:[#allocation2] sm:$0x7]
    %v752 = vunpack.c.l.bf16 %v751
    %v753 = vadd.f32 %v752, %v705
    %v754 = vxor.u32 %v753, 2147483648
    %v755 = vmul.f32 %v754, 1.442695
    %v756 = vpow.pop %v755
    %v757 = vadd.f32 %v756, 1.0
    %v758 = vrcp.pop %v757
    %v759 = vmul.f32 1.0, %v758
    %v761 = vrot.slane %v752, 2
    %v763 = vadd.f32 %v761, %v707
    %v764 = vxor.u32 %v763, 2147483648
    %v765 = vmul.f32 %v764, 1.442695
    %v766 = vpow.pop %v765
    %v767 = vadd.f32 %v766, 1.0
    %v768 = vrcp.pop %v767
    %v769 = vmul.f32 1.0, %v768
    %v770 = vadd.f32 %v746, %v540
    %v771 = vmul.f32 %v759, %v770
    %v772 = vrot.slane %v752, 4
    %v774 = vadd.f32 %v772, %v771
    %v775 = vtanh.pop %v774
    %v776 = vsub.f32 1.0, %v769
    %v777 = vmul.f32 %v776, %v775
    %v778 = vmul.f32 %v769, 0.0
    %v779 = vadd.f32 %v777, %v778
    %v780 = vpack.c.bf16 %v779, %v779
    %781 = vst [vmem:[#allocation2 + $0x2] sm:$0x1] %v780
    %782 = vmatprep.subr.bf16.mxu0 %v644
    %783 = vmatpush1.bf16.msra.mxu0 %v643
    %784 = vmatprep.subr.bf16.mxu0 %v641
    %785 = vmatpush1.bf16.msra.mxu0 %v640
    %786 = vmatprep.subr.bf16.mxu0 %v638
    %787 = vmatpush1.bf16.msra.mxu0 %v637
    %788 = vmatprep.subr.bf16.mxu0 %v635
    %789 = vmatpush1.bf16.msra.mxu0 %v634
    %790 = vmatprep.subr.bf16.mxu0 %v632
    %791 = vmatpush1.bf16.msra.mxu0 %v631
    %792 = vmatprep.subr.bf16.mxu0 %v629
    %793 = vmatpush1.bf16.msra.mxu0 %v628
    %794 = vmatprep.subr.bf16.mxu0 %v626
    %795 = vmatpush1.bf16.msra.mxu0 %v625
    %796 = vmatprep.subr.bf16.mxu0 %v623
    %797 = vmatpush1.bf16.msra.mxu0 %v622
    %798 = vmatprep.subr.bf16.mxu0 0
    %799 = vmatpush2.bf16.msra.mxu0 0
    %800 = vmatprep.subr.bf16.mxu0 0
    %801 = vmatpush2.bf16.msra.mxu0 0
    %802 = vmatprep.subr.bf16.mxu0 0
    %803 = vmatpush2.bf16.msra.mxu0 0
    %804 = vmatprep.subr.bf16.mxu0 0
    %805 = vmatpush2.bf16.msra.mxu0 0
    %806 = vmatprep.subr.bf16.mxu0 0
    %807 = vmatpush2.bf16.msra.mxu0 0
    %808 = vmatprep.subr.bf16.mxu0 0
    %809 = vmatpush2.bf16.msra.mxu0 0
    %810 = vmatprep.subr.bf16.mxu0 0
    %811 = vmatpush2.bf16.msra.mxu0 0
    %812 = vmatprep.subr.bf16.mxu0 0
    %813 = vmatpush2.bf16.msra.mxu0 0
    %814 = vmatprep.mubr.bf16.mxu0 0
    %815 = vmatmul.mubr.bf16.gmra.mxu0 %v780
    %v816 = vpop.f32.mrf.mxu0
    %v817 = vadd.f32 0.0, %v816
    %v818 = vpop.f32.mrf.mxu0
    %v819 = vadd.f32 0.0, %v818
    %v820 = vpop.f32.mrf.mxu0
    %v821 = vpop.f32.mrf.mxu0
    %822 = vdwg.mxu0
    %823 = vmatprep.subr.bf16.mxu0 0
    %824 = vmatpush1.bf16.msra.mxu0 %v645
    %825 = vmatprep.subr.bf16.mxu0 0
    %826 = vmatpush1.bf16.msra.mxu0 %v642
    %827 = vmatprep.subr.bf16.mxu0 0
    %828 = vmatpush1.bf16.msra.mxu0 %v639
    %829 = vmatprep.subr.bf16.mxu0 0
    %830 = vmatpush1.bf16.msra.mxu0 %v636
    %831 = vmatprep.subr.bf16.mxu0 0
    %832 = vmatpush1.bf16.msra.mxu0 %v633
    %833 = vmatprep.subr.bf16.mxu0 0
    %834 = vmatpush1.bf16.msra.mxu0 %v630
    %835 = vmatprep.subr.bf16.mxu0 0
    %836 = vmatpush1.bf16.msra.mxu0 %v627
    %837 = vmatprep.subr.bf16.mxu0 0
    %838 = vmatpush1.bf16.msra.mxu0 %v624
    %839 = vmatprep.subr.bf16.mxu0 0
    %840 = vmatpush2.bf16.msra.mxu0 0
    %841 = vmatprep.subr.bf16.mxu0 0
    %842 = vmatpush2.bf16.msra.mxu0 0
    %843 = vmatprep.subr.bf16.mxu0 0
    %844 = vmatpush2.bf16.msra.mxu0 0
    %845 = vmatprep.subr.bf16.mxu0 0
    %846 = vmatpush2.bf16.msra.mxu0 0
    %847 = vmatprep.subr.bf16.mxu0 0
    %848 = vmatpush2.bf16.msra.mxu0 0
    %849 = vmatprep.subr.bf16.mxu0 0
    %850 = vmatpush2.bf16.msra.mxu0 0
    %851 = vmatprep.subr.bf16.mxu0 0
    %852 = vmatpush2.bf16.msra.mxu0 0
    %853 = vmatprep.subr.bf16.mxu0 0
    %854 = vmatpush2.bf16.msra.mxu0 0
    %855 = vmatprep.mubr.bf16.mxu0 0
    %856 = vmatmul.mubr.bf16.gmra.mxu0 %v780
    %v857 = vpop.f32.mrf.mxu0
    %v858 = vadd.f32 0.0, %v857
    %v859 = vpop.f32.mrf.mxu0
    %v860 = vpop.f32.mrf.mxu0
    %v861 = vpop.f32.mrf.mxu0
    %862 = vdwg.mxu0
    %s863 = scalar_lea.vmem [#allocation2], 3
    %v864 = vld [vmem:[%s863] sm:$0x7]
    %v865 = vunpack.c.l.bf16 %v864
    %v866 = vadd.f32 %v865, %v817
    %v867 = vxor.u32 %v866, 2147483648
    %v868 = vmul.f32 %v867, 1.442695
    %v869 = vpow.pop %v868
    %v870 = vadd.f32 %v869, 1.0
    %v871 = vrcp.pop %v870
    %v872 = vmul.f32 1.0, %v871
    %v874 = vrot.slane %v865, 2
    %v876 = vadd.f32 %v874, %v819
    %v877 = vxor.u32 %v876, 2147483648
    %v878 = vmul.f32 %v877, 1.442695
    %v879 = vpow.pop %v878
    %v880 = vadd.f32 %v879, 1.0
    %v881 = vrcp.pop %v880
    %v882 = vmul.f32 1.0, %v881
    %v883 = vadd.f32 %v858, %v540
    %v884 = vmul.f32 %v872, %v883
    %v885 = vrot.slane %v865, 4
    %v887 = vadd.f32 %v885, %v884
    %v888 = vtanh.pop %v887
    %v889 = vsub.f32 1.0, %v882
    %v890 = vmul.f32 %v889, %v888
    %v891 = vmul.f32 %v882, %v779
    %v892 = vadd.f32 %v890, %v891
    %v893 = vpack.c.bf16 %v892, %v892
    %894 = vst [vmem:[%s863 + $0x2] sm:$0x1] %v893
    %895 = vmatprep.subr.bf16.mxu0 %v644
    %896 = vmatpush1.bf16.msra.mxu0 %v643
    %897 = vmatprep.subr.bf16.mxu0 %v641
    %898 = vmatpush1.bf16.msra.mxu0 %v640
    %899 = vmatprep.subr.bf16.mxu0 %v638
    %900 = vmatpush1.bf16.msra.mxu0 %v637
    %901 = vmatprep.subr.bf16.mxu0 %v635
    %902 = vmatpush1.bf16.msra.mxu0 %v634
    %903 = vmatprep.subr.bf16.mxu0 %v632
    %904 = vmatpush1.bf16.msra.mxu0 %v631
    %905 = vmatprep.subr.bf16.mxu0 %v629
    %906 = vmatpush1.bf16.msra.mxu0 %v628
    %907 = vmatprep.subr.bf16.mxu0 %v626
    %908 = vmatpush1.bf16.msra.mxu0 %v625
    %909 = vmatprep.subr.bf16.mxu0 %v623
    %910 = vmatpush1.bf16.msra.mxu0 %v622
    %911 = vmatprep.subr.bf16.mxu0 0
    %912 = vmatpush2.bf16.msra.mxu0 0
    %913 = vmatprep.subr.bf16.mxu0 0
    %914 = vmatpush2.bf16.msra.mxu0 0
    %915 = vmatprep.subr.bf16.mxu0 0
    %916 = vmatpush2.bf16.msra.mxu0 0
    %917 = vmatprep.subr.bf16.mxu0 0
    %918 = vmatpush2.bf16.msra.mxu0 0
    %919 = vmatprep.subr.bf16.mxu0 0
    %920 = vmatpush2.bf16.msra.mxu0 0
    %921 = vmatprep.subr.bf16.mxu0 0
    %922 = vmatpush2.bf16.msra.mxu0 0
    %923 = vmatprep.subr.bf16.mxu0 0
    %924 = vmatpush2.bf16.msra.mxu0 0
    %925 = vmatprep.subr.bf16.mxu0 0
    %926 = vmatpush2.bf16.msra.mxu0 0
    %927 = vmatprep.mubr.bf16.mxu0 0
    %928 = vmatmul.mubr.bf16.gmra.mxu0 %v893
    %v929 = vpop.f32.mrf.mxu0
    %v930 = vadd.f32 0.0, %v929
    %v931 = vpop.f32.mrf.mxu0
    %v932 = vadd.f32 0.0, %v931
    %v933 = vpop.f32.mrf.mxu0
    %v934 = vpop.f32.mrf.mxu0
    %935 = vdwg.mxu0
    %936 = vmatprep.subr.bf16.mxu0 0
    %937 = vmatpush1.bf16.msra.mxu0 %v645
    %938 = vmatprep.subr.bf16.mxu0 0
    %939 = vmatpush1.bf16.msra.mxu0 %v642
    %940 = vmatprep.subr.bf16.mxu0 0
    %941 = vmatpush1.bf16.msra.mxu0 %v639
    %942 = vmatprep.subr.bf16.mxu0 0
    %943 = vmatpush1.bf16.msra.mxu0 %v636
    %944 = vmatprep.subr.bf16.mxu0 0
    %945 = vmatpush1.bf16.msra.mxu0 %v633
    %946 = vmatprep.subr.bf16.mxu0 0
    %947 = vmatpush1.bf16.msra.mxu0 %v630
    %948 = vmatprep.subr.bf16.mxu0 0
    %949 = vmatpush1.bf16.msra.mxu0 %v627
    %950 = vmatprep.subr.bf16.mxu0 0
    %951 = vmatpush1.bf16.msra.mxu0 %v624
    %952 = vmatprep.subr.bf16.mxu0 0
    %953 = vmatpush2.bf16.msra.mxu0 0
    %954 = vmatprep.subr.bf16.mxu0 0
    %955 = vmatpush2.bf16.msra.mxu0 0
    %956 = vmatprep.subr.bf16.mxu0 0
    %957 = vmatpush2.bf16.msra.mxu0 0
    %958 = vmatprep.subr.bf16.mxu0 0
    %959 = vmatpush2.bf16.msra.mxu0 0
    %960 = vmatprep.subr.bf16.mxu0 0
    %961 = vmatpush2.bf16.msra.mxu0 0
    %962 = vmatprep.subr.bf16.mxu0 0
    %963 = vmatpush2.bf16.msra.mxu0 0
    %964 = vmatprep.subr.bf16.mxu0 0
    %965 = vmatpush2.bf16.msra.mxu0 0
    %966 = vmatprep.subr.bf16.mxu0 0
    %967 = vmatpush2.bf16.msra.mxu0 0
    %968 = vmatprep.mubr.bf16.mxu0 0
    %969 = vmatmul.mubr.bf16.gmra.mxu0 %v893
    %v970 = vpop.f32.mrf.mxu0
    %v971 = vadd.f32 0.0, %v970
    %v972 = vpop.f32.mrf.mxu0
    %v973 = vpop.f32.mrf.mxu0
    %v974 = vpop.f32.mrf.mxu0
    %975 = vdwg.mxu0
    %s976 = scalar_lea.vmem [#allocation2], 6
    %v977 = vld [vmem:[%s976] sm:$0x7]
    %v978 = vunpack.c.l.bf16 %v977
    %v979 = vadd.f32 %v978, %v930
    %v980 = vxor.u32 %v979, 2147483648
    %v981 = vmul.f32 %v980, 1.442695
    %v982 = vpow.pop %v981
    %v983 = vadd.f32 %v982, 1.0
    %v984 = vrcp.pop %v983
    %v985 = vmul.f32 1.0, %v984
    %v987 = vrot.slane %v978, 2
    %v989 = vadd.f32 %v987, %v932
    %v990 = vxor.u32 %v989, 2147483648
    %v991 = vmul.f32 %v990, 1.442695
    %v992 = vpow.pop %v991
    %v993 = vadd.f32 %v992, 1.0
    %v994 = vrcp.pop %v993
    %v995 = vmul.f32 1.0, %v994
    %v996 = vadd.f32 %v971, %v540
    %v997 = vmul.f32 %v985, %v996
    %v998 = vrot.slane %v978, 4
    %v1000 = vadd.f32 %v998, %v997
    %v1001 = vtanh.pop %v1000
    %v1002 = vsub.f32 1.0, %v995
    %v1003 = vmul.f32 %v1002, %v1001
    %v1004 = vmul.f32 %v995, %v892
    %v1005 = vadd.f32 %v1003, %v1004
    %v1006 = vpack.c.bf16 %v1005, %v1005
    %1007 = vst [vmem:[%s976 + $0x2] sm:$0x1] %v1006
    %1008 = vmatprep.subr.bf16.mxu0 %v644
    %1009 = vmatpush1.bf16.msra.mxu0 %v643
    %1010 = vmatprep.subr.bf16.mxu0 %v641
    %1011 = vmatpush1.bf16.msra.mxu0 %v640
    %1012 = vmatprep.subr.bf16.mxu0 %v638
    %1013 = vmatpush1.bf16.msra.mxu0 %v637
    %1014 = vmatprep.subr.bf16.mxu0 %v635
    %1015 = vmatpush1.bf16.msra.mxu0 %v634
    %1016 = vmatprep.subr.bf16.mxu0 %v632
    %1017 = vmatpush1.bf16.msra.mxu0 %v631
    %1018 = vmatprep.subr.bf16.mxu0 %v629
    %1019 = vmatpush1.bf16.msra.mxu0 %v628
    %1020 = vmatprep.subr.bf16.mxu0 %v626
    %1021 = vmatpush1.bf16.msra.mxu0 %v625
    %1022 = vmatprep.subr.bf16.mxu0 %v623
    %1023 = vmatpush1.bf16.msra.mxu0 %v622
    %1024 = vmatprep.subr.bf16.mxu0 0
    %1025 = vmatpush2.bf16.msra.mxu0 0
    %1026 = vmatprep.subr.bf16.mxu0 0
    %1027 = vmatpush2.bf16.msra.mxu0 0
    %1028 = vmatprep.subr.bf16.mxu0 0
    %1029 = vmatpush2.bf16.msra.mxu0 0
    %1030 = vmatprep.subr.bf16.mxu0 0
    %1031 = vmatpush2.bf16.msra.mxu0 0
    %1032 = vmatprep.subr.bf16.mxu0 0
    %1033 = vmatpush2.bf16.msra.mxu0 0
    %1034 = vmatprep.subr.bf16.mxu0 0
    %1035 = vmatpush2.bf16.msra.mxu0 0
    %1036 = vmatprep.subr.bf16.mxu0 0
    %1037 = vmatpush2.bf16.msra.mxu0 0
    %1038 = vmatprep.subr.bf16.mxu0 0
    %1039 = vmatpush2.bf16.msra.mxu0 0
    %1040 = vmatprep.mubr.bf16.mxu0 0
    %1041 = vmatmul.mubr.bf16.gmra.mxu0 %v1006
    %v1042 = vpop.f32.mrf.mxu0
    %v1043 = vadd.f32 0.0, %v1042
    %v1044 = vpop.f32.mrf.mxu0
    %v1045 = vadd.f32 0.0, %v1044
    %v1046 = vpop.f32.mrf.mxu0
    %v1047 = vpop.f32.mrf.mxu0
    %1048 = vdwg.mxu0
    %1049 = vmatprep.subr.bf16.mxu0 0
    %1050 = vmatpush1.bf16.msra.mxu0 %v645
    %1051 = vmatprep.subr.bf16.mxu0 0
    %1052 = vmatpush1.bf16.msra.mxu0 %v642
    %1053 = vmatprep.subr.bf16.mxu0 0
    %1054 = vmatpush1.bf16.msra.mxu0 %v639
    %1055 = vmatprep.subr.bf16.mxu0 0
    %1056 = vmatpush1.bf16.msra.mxu0 %v636
    %1057 = vmatprep.subr.bf16.mxu0 0
    %1058 = vmatpush1.bf16.msra.mxu0 %v633
    %1059 = vmatprep.subr.bf16.mxu0 0
    %1060 = vmatpush1.bf16.msra.mxu0 %v630
    %1061 = vmatprep.subr.bf16.mxu0 0
    %1062 = vmatpush1.bf16.msra.mxu0 %v627
    %1063 = vmatprep.subr.bf16.mxu0 0
    %1064 = vmatpush1.bf16.msra.mxu0 %v624
    %1065 = vmatprep.subr.bf16.mxu0 0
    %1066 = vmatpush2.bf16.msra.mxu0 0
    %1067 = vmatprep.subr.bf16.mxu0 0
    %1068 = vmatpush2.bf16.msra.mxu0 0
    %1069 = vmatprep.subr.bf16.mxu0 0
    %1070 = vmatpush2.bf16.msra.mxu0 0
    %1071 = vmatprep.subr.bf16.mxu0 0
    %1072 = vmatpush2.bf16.msra.mxu0 0
    %1073 = vmatprep.subr.bf16.mxu0 0
    %1074 = vmatpush2.bf16.msra.mxu0 0
    %1075 = vmatprep.subr.bf16.mxu0 0
    %1076 = vmatpush2.bf16.msra.mxu0 0
    %1077 = vmatprep.subr.bf16.mxu0 0
    %1078 = vmatpush2.bf16.msra.mxu0 0
    %1079 = vmatprep.subr.bf16.mxu0 0
    %1080 = vmatpush2.bf16.msra.mxu0 0
    %1081 = vmatprep.mubr.bf16.mxu0 0
    %1082 = vmatmul.mubr.bf16.gmra.mxu0 %v1006
    %v1083 = vpop.f32.mrf.mxu0
    %v1084 = vadd.f32 0.0, %v1083
    %v1085 = vpop.f32.mrf.mxu0
    %v1086 = vpop.f32.mrf.mxu0
    %v1087 = vpop.f32.mrf.mxu0
    %1088 = vdwg.mxu0
    %s1089 = scalar_lea.vmem [#allocation2], 9
    %v1090 = vld [vmem:[%s1089] sm:$0x7]
    %v1091 = vunpack.c.l.bf16 %v1090
    %v1092 = vadd.f32 %v1091, %v1043
    %v1093 = vxor.u32 %v1092, 2147483648
    %v1094 = vmul.f32 %v1093, 1.442695
    %v1095 = vpow.pop %v1094
    %v1096 = vadd.f32 %v1095, 1.0
    %v1097 = vrcp.pop %v1096
    %v1098 = vmul.f32 1.0, %v1097
    %v1100 = vrot.slane %v1091, 2
    %v1102 = vadd.f32 %v1100, %v1045
    %v1103 = vxor.u32 %v1102, 2147483648
    %v1104 = vmul.f32 %v1103, 1.442695
    %v1105 = vpow.pop %v1104
    %v1106 = vadd.f32 %v1105, 1.0
    %v1107 = vrcp.pop %v1106
    %v1108 = vmul.f32 1.0, %v1107
    %v1109 = vadd.f32 %v1084, %v540
    %v1110 = vmul.f32 %v1098, %v1109
    %v1111 = vrot.slane %v1091, 4
    %v1113 = vadd.f32 %v1111, %v1110
    %v1114 = vtanh.pop %v1113
    %v1115 = vsub.f32 1.0, %v1108
    %v1116 = vmul.f32 %v1115, %v1114
    %v1117 = vmul.f32 %v1108, %v1005
    %v1118 = vadd.f32 %v1116, %v1117
    %v1119 = vpack.c.bf16 %v1118, %v1118
    %1120 = vst [vmem:[%s1089 + $0x2] sm:$0x1] %v1119
    %1121 = vmatprep.subr.bf16.mxu0 %v644
    %1122 = vmatpush1.bf16.msra.mxu0 %v643
    %1123 = vmatprep.subr.bf16.mxu0 %v641
    %1124 = vmatpush1.bf16.msra.mxu0 %v640
    %1125 = vmatprep.subr.bf16.mxu0 %v638
    %1126 = vmatpush1.bf16.msra.mxu0 %v637
    %1127 = vmatprep.subr.bf16.mxu0 %v635
    %1128 = vmatpush1.bf16.msra.mxu0 %v634
    %1129 = vmatprep.subr.bf16.mxu0 %v632
    %1130 = vmatpush1.bf16.msra.mxu0 %v631
    %1131 = vmatprep.subr.bf16.mxu0 %v629
    %1132 = vmatpush1.bf16.msra.mxu0 %v628
    %1133 = vmatprep.subr.bf16.mxu0 %v626
    %1134 = vmatpush1.bf16.msra.mxu0 %v625
    %1135 = vmatprep.subr.bf16.mxu0 %v623
    %1136 = vmatpush1.bf16.msra.mxu0 %v622
    %1137 = vmatprep.subr.bf16.mxu0 0
    %1138 = vmatpush2.bf16.msra.mxu0 0
    %1139 = vmatprep.subr.bf16.mxu0 0
    %1140 = vmatpush2.bf16.msra.mxu0 0
    %1141 = vmatprep.subr.bf16.mxu0 0
    %1142 = vmatpush2.bf16.msra.mxu0 0
    %1143 = vmatprep.subr.bf16.mxu0 0
    %1144 = vmatpush2.bf16.msra.mxu0 0
    %1145 = vmatprep.subr.bf16.mxu0 0
    %1146 = vmatpush2.bf16.msra.mxu0 0
    %1147 = vmatprep.subr.bf16.mxu0 0
    %1148 = vmatpush2.bf16.msra.mxu0 0
    %1149 = vmatprep.subr.bf16.mxu0 0
    %1150 = vmatpush2.bf16.msra.mxu0 0
    %1151 = vmatprep.subr.bf16.mxu0 0
    %1152 = vmatpush2.bf16.msra.mxu0 0
    %1153 = vmatprep.mubr.bf16.mxu0 0
    %1154 = vmatmul.mubr.bf16.gmra.mxu0 %v1119
    %v1155 = vpop.f32.mrf.mxu0
    %v1156 = vadd.f32 0.0, %v1155
    %v1157 = vpop.f32.mrf.mxu0
    %v1158 = vadd.f32 0.0, %v1157
    %v1159 = vpop.f32.mrf.mxu0
    %v1160 = vpop.f32.mrf.mxu0
    %1161 = vdwg.mxu0
    %1162 = vmatprep.subr.bf16.mxu0 0
    %1163 = vmatpush1.bf16.msra.mxu0 %v645
    %1164 = vmatprep.subr.bf16.mxu0 0
    %1165 = vmatpush1.bf16.msra.mxu0 %v642
    %1166 = vmatprep.subr.bf16.mxu0 0
    %1167 = vmatpush1.bf16.msra.mxu0 %v639
    %1168 = vmatprep.subr.bf16.mxu0 0
    %1169 = vmatpush1.bf16.msra.mxu0 %v636
    %1170 = vmatprep.subr.bf16.mxu0 0
    %1171 = vmatpush1.bf16.msra.mxu0 %v633
    %1172 = vmatprep.subr.bf16.mxu0 0
    %1173 = vmatpush1.bf16.msra.mxu0 %v630
    %1174 = vmatprep.subr.bf16.mxu0 0
    %1175 = vmatpush1.bf16.msra.mxu0 %v627
    %1176 = vmatprep.subr.bf16.mxu0 0
    %1177 = vmatpush1.bf16.msra.mxu0 %v624
    %1178 = vmatprep.subr.bf16.mxu0 0
    %1179 = vmatpush2.bf16.msra.mxu0 0
    %1180 = vmatprep.subr.bf16.mxu0 0
    %1181 = vmatpush2.bf16.msra.mxu0 0
    %1182 = vmatprep.subr.bf16.mxu0 0
    %1183 = vmatpush2.bf16.msra.mxu0 0
    %1184 = vmatprep.subr.bf16.mxu0 0
    %1185 = vmatpush2.bf16.msra.mxu0 0
    %1186 = vmatprep.subr.bf16.mxu0 0
    %1187 = vmatpush2.bf16.msra.mxu0 0
    %1188 = vmatprep.subr.bf16.mxu0 0
    %1189 = vmatpush2.bf16.msra.mxu0 0
    %1190 = vmatprep.subr.bf16.mxu0 0
    %1191 = vmatpush2.bf16.msra.mxu0 0
    %1192 = vmatprep.subr.bf16.mxu0 0
    %1193 = vmatpush2.bf16.msra.mxu0 0
    %1194 = vmatprep.mubr.bf16.mxu0 0
    %1195 = vmatmul.mubr.bf16.gmra.mxu0 %v1119
    %v1196 = vpop.f32.mrf.mxu0
    %v1197 = vadd.f32 0.0, %v1196
    %v1198 = vpop.f32.mrf.mxu0
    %v1199 = vpop.f32.mrf.mxu0
    %v1200 = vpop.f32.mrf.mxu0
    %1201 = vdwg.mxu0
    %s1202 = scalar_lea.vmem [#allocation2], 12
    %v1203 = vld [vmem:[%s1202] sm:$0x7]
    %v1204 = vunpack.c.l.bf16 %v1203
    %v1205 = vadd.f32 %v1204, %v1156
    %v1206 = vxor.u32 %v1205, 2147483648
    %v1207 = vmul.f32 %v1206, 1.442695
    %v1208 = vpow.pop %v1207
    %v1209 = vadd.f32 %v1208, 1.0
    %v1210 = vrcp.pop %v1209
    %v1211 = vmul.f32 1.0, %v1210
    %v1213 = vrot.slane %v1204, 2
    %v1215 = vadd.f32 %v1213, %v1158
    %v1216 = vxor.u32 %v1215, 2147483648
    %v1217 = vmul.f32 %v1216, 1.442695
    %v1218 = vpow.pop %v1217
    %v1219 = vadd.f32 %v1218, 1.0
    %v1220 = vrcp.pop %v1219
    %v1221 = vmul.f32 1.0, %v1220
    %v1222 = vadd.f32 %v1197, %v540
    %v1223 = vmul.f32 %v1211, %v1222
    %v1224 = vrot.slane %v1204, 4
    %v1226 = vadd.f32 %v1224, %v1223
    %v1227 = vtanh.pop %v1226
    %v1228 = vsub.f32 1.0, %v1221
    %v1229 = vmul.f32 %v1228, %v1227
    %v1230 = vmul.f32 %v1221, %v1118
    %v1231 = vadd.f32 %v1229, %v1230
    %v1232 = vpack.c.bf16 %v1231, %v1231
    %1233 = vst [vmem:[%s1202 + $0x2] sm:$0x1] %v1232
    %1234 = vmatprep.subr.bf16.mxu0 %v644
    %1235 = vmatpush1.bf16.msra.mxu0 %v643
    %1236 = vmatprep.subr.bf16.mxu0 %v641
    %1237 = vmatpush1.bf16.msra.mxu0 %v640
    %1238 = vmatprep.subr.bf16.mxu0 %v638
    %1239 = vmatpush1.bf16.msra.mxu0 %v637
    %1240 = vmatprep.subr.bf16.mxu0 %v635
    %1241 = vmatpush1.bf16.msra.mxu0 %v634
    %1242 = vmatprep.subr.bf16.mxu0 %v632
    %1243 = vmatpush1.bf16.msra.mxu0 %v631
    %1244 = vmatprep.subr.bf16.mxu0 %v629
    %1245 = vmatpush1.bf16.msra.mxu0 %v628
    %1246 = vmatprep.subr.bf16.mxu0 %v626
    %1247 = vmatpush1.bf16.msra.mxu0 %v625
    %1248 = vmatprep.subr.bf16.mxu0 %v623
    %1249 = vmatpush1.bf16.msra.mxu0 %v622
    %1250 = vmatprep.subr.bf16.mxu0 0
    %1251 = vmatpush2.bf16.msra.mxu0 0
    %1252 = vmatprep.subr.bf16.mxu0 0
    %1253 = vmatpush2.bf16.msra.mxu0 0
    %1254 = vmatprep.subr.bf16.mxu0 0
    %1255 = vmatpush2.bf16.msra.mxu0 0
    %1256 = vmatprep.subr.bf16.mxu0 0
    %1257 = vmatpush2.bf16.msra.mxu0 0
    %1258 = vmatprep.subr.bf16.mxu0 0
    %1259 = vmatpush2.bf16.msra.mxu0 0
    %1260 = vmatprep.subr.bf16.mxu0 0
    %1261 = vmatpush2.bf16.msra.mxu0 0
    %1262 = vmatprep.subr.bf16.mxu0 0
    %1263 = vmatpush2.bf16.msra.mxu0 0
    %1264 = vmatprep.subr.bf16.mxu0 0
    %1265 = vmatpush2.bf16.msra.mxu0 0
    %1266 = vmatprep.mubr.bf16.mxu0 0
    %1267 = vmatmul.mubr.bf16.gmra.mxu0 %v1232
    %v1268 = vpop.f32.mrf.mxu0
    %v1269 = vadd.f32 0.0, %v1268
    %v1270 = vpop.f32.mrf.mxu0
    %v1271 = vadd.f32 0.0, %v1270
    %v1272 = vpop.f32.mrf.mxu0
    %v1273 = vpop.f32.mrf.mxu0
    %1274 = vdwg.mxu0
    %1275 = vmatprep.subr.bf16.mxu0 0
    %1276 = vmatpush1.bf16.msra.mxu0 %v645
    %1277 = vmatprep.subr.bf16.mxu0 0
    %1278 = vmatpush1.bf16.msra.mxu0 %v642
    %1279 = vmatprep.subr.bf16.mxu0 0
    %1280 = vmatpush1.bf16.msra.mxu0 %v639
    %1281 = vmatprep.subr.bf16.mxu0 0
    %1282 = vmatpush1.bf16.msra.mxu0 %v636
    %1283 = vmatprep.subr.bf16.mxu0 0
    %1284 = vmatpush1.bf16.msra.mxu0 %v633
    %1285 = vmatprep.subr.bf16.mxu0 0
    %1286 = vmatpush1.bf16.msra.mxu0 %v630
    %1287 = vmatprep.subr.bf16.mxu0 0
    %1288 = vmatpush1.bf16.msra.mxu0 %v627
    %1289 = vmatprep.subr.bf16.mxu0 0
    %1290 = vmatpush1.bf16.msra.mxu0 %v624
    %1291 = vmatprep.subr.bf16.mxu0 0
    %1292 = vmatpush2.bf16.msra.mxu0 0
    %1293 = vmatprep.subr.bf16.mxu0 0
    %1294 = vmatpush2.bf16.msra.mxu0 0
    %1295 = vmatprep.subr.bf16.mxu0 0
    %1296 = vmatpush2.bf16.msra.mxu0 0
    %1297 = vmatprep.subr.bf16.mxu0 0
    %1298 = vmatpush2.bf16.msra.mxu0 0
    %1299 = vmatprep.subr.bf16.mxu0 0
    %1300 = vmatpush2.bf16.msra.mxu0 0
    %1301 = vmatprep.subr.bf16.mxu0 0
    %1302 = vmatpush2.bf16.msra.mxu0 0
    %1303 = vmatprep.subr.bf16.mxu0 0
    %1304 = vmatpush2.bf16.msra.mxu0 0
    %1305 = vmatprep.subr.bf16.mxu0 0
    %1306 = vmatpush2.bf16.msra.mxu0 0
    %1307 = vmatprep.mubr.bf16.mxu0 0
    %1308 = vmatmul.mubr.bf16.gmra.mxu0 %v1232
    %v1309 = vpop.f32.mrf.mxu0
    %v1310 = vadd.f32 0.0, %v1309
    %v1311 = vpop.f32.mrf.mxu0
    %v1312 = vpop.f32.mrf.mxu0
    %v1313 = vpop.f32.mrf.mxu0
    %1314 = vdwg.mxu0
    %s1315 = scalar_lea.vmem [#allocation2], 15
    %v1316 = vld [vmem:[%s1315] sm:$0x7]
    %v1317 = vunpack.c.l.bf16 %v1316
    %v1318 = vadd.f32 %v1317, %v1269
    %v1319 = vxor.u32 %v1318, 2147483648
    %v1320 = vmul.f32 %v1319, 1.442695
    %v1321 = vpow.pop %v1320
    %v1322 = vadd.f32 %v1321, 1.0
    %v1323 = vrcp.pop %v1322
    %v1324 = vmul.f32 1.0, %v1323
    %v1326 = vrot.slane %v1317, 2
    %v1328 = vadd.f32 %v1326, %v1271
    %v1329 = vxor.u32 %v1328, 2147483648
    %v1330 = vmul.f32 %v1329, 1.442695
    %v1331 = vpow.pop %v1330
    %v1332 = vadd.f32 %v1331, 1.0
    %v1333 = vrcp.pop %v1332
    %v1334 = vmul.f32 1.0, %v1333
    %v1335 = vadd.f32 %v1310, %v540
    %v1336 = vmul.f32 %v1324, %v1335
    %v1337 = vrot.slane %v1317, 4
    %v1339 = vadd.f32 %v1337, %v1336
    %v1340 = vtanh.pop %v1339
    %v1341 = vsub.f32 1.0, %v1334
    %v1342 = vmul.f32 %v1341, %v1340
    %v1343 = vmul.f32 %v1334, %v1231
    %v1344 = vadd.f32 %v1342, %v1343
    %v1345 = vpack.c.bf16 %v1344, %v1344
    %1346 = vst [vmem:[%s1315 + $0x2] sm:$0x1] %v1345
    %1347 = vmatprep.subr.bf16.mxu0 %v644
    %1348 = vmatpush1.bf16.msra.mxu0 %v643
    %1349 = vmatprep.subr.bf16.mxu0 %v641
    %1350 = vmatpush1.bf16.msra.mxu0 %v640
    %1351 = vmatprep.subr.bf16.mxu0 %v638
    %1352 = vmatpush1.bf16.msra.mxu0 %v637
    %1353 = vmatprep.subr.bf16.mxu0 %v635
    %1354 = vmatpush1.bf16.msra.mxu0 %v634
    %1355 = vmatprep.subr.bf16.mxu0 %v632
    %1356 = vmatpush1.bf16.msra.mxu0 %v631
    %1357 = vmatprep.subr.bf16.mxu0 %v629
    %1358 = vmatpush1.bf16.msra.mxu0 %v628
    %1359 = vmatprep.subr.bf16.mxu0 %v626
    %1360 = vmatpush1.bf16.msra.mxu0 %v625
    %1361 = vmatprep.subr.bf16.mxu0 %v623
    %1362 = vmatpush1.bf16.msra.mxu0 %v622
    %1363 = vmatprep.subr.bf16.mxu0 0
    %1364 = vmatpush2.bf16.msra.mxu0 0
    %1365 = vmatprep.subr.bf16.mxu0 0
    %1366 = vmatpush2.bf16.msra.mxu0 0
    %1367 = vmatprep.subr.bf16.mxu0 0
    %1368 = vmatpush2.bf16.msra.mxu0 0
    %1369 = vmatprep.subr.bf16.mxu0 0
    %1370 = vmatpush2.bf16.msra.mxu0 0
    %1371 = vmatprep.subr.bf16.mxu0 0
    %1372 = vmatpush2.bf16.msra.mxu0 0
    %1373 = vmatprep.subr.bf16.mxu0 0
    %1374 = vmatpush2.bf16.msra.mxu0 0
    %1375 = vmatprep.subr.bf16.mxu0 0
    %1376 = vmatpush2.bf16.msra.mxu0 0
    %1377 = vmatprep.subr.bf16.mxu0 0
    %1378 = vmatpush2.bf16.msra.mxu0 0
    %1379 = vmatprep.mubr.bf16.mxu0 0
    %1380 = vmatmul.mubr.bf16.gmra.mxu0 %v1345
    %v1381 = vpop.f32.mrf.mxu0
    %v1382 = vadd.f32 0.0, %v1381
    %v1383 = vpop.f32.mrf.mxu0
    %v1384 = vadd.f32 0.0, %v1383
    %v1385 = vpop.f32.mrf.mxu0
    %v1386 = vpop.f32.mrf.mxu0
    %1387 = vdwg.mxu0
    %1388 = vmatprep.subr.bf16.mxu0 0
    %1389 = vmatpush1.bf16.msra.mxu0 %v645
    %1390 = vmatprep.subr.bf16.mxu0 0
    %1391 = vmatpush1.bf16.msra.mxu0 %v642
    %1392 = vmatprep.subr.bf16.mxu0 0
    %1393 = vmatpush1.bf16.msra.mxu0 %v639
    %1394 = vmatprep.subr.bf16.mxu0 0
    %1395 = vmatpush1.bf16.msra.mxu0 %v636
    %1396 = vmatprep.subr.bf16.mxu0 0
    %1397 = vmatpush1.bf16.msra.mxu0 %v633
    %1398 = vmatprep.subr.bf16.mxu0 0
    %1399 = vmatpush1.bf16.msra.mxu0 %v630
    %1400 = vmatprep.subr.bf16.mxu0 0
    %1401 = vmatpush1.bf16.msra.mxu0 %v627
    %1402 = vmatprep.subr.bf16.mxu0 0
    %1403 = vmatpush1.bf16.msra.mxu0 %v624
    %1404 = vmatprep.subr.bf16.mxu0 0
    %1405 = vmatpush2.bf16.msra.mxu0 0
    %1406 = vmatprep.subr.bf16.mxu0 0
    %1407 = vmatpush2.bf16.msra.mxu0 0
    %1408 = vmatprep.subr.bf16.mxu0 0
    %1409 = vmatpush2.bf16.msra.mxu0 0
    %1410 = vmatprep.subr.bf16.mxu0 0
    %1411 = vmatpush2.bf16.msra.mxu0 0
    %1412 = vmatprep.subr.bf16.mxu0 0
    %1413 = vmatpush2.bf16.msra.mxu0 0
    %1414 = vmatprep.subr.bf16.mxu0 0
    %1415 = vmatpush2.bf16.msra.mxu0 0
    %1416 = vmatprep.subr.bf16.mxu0 0
    %1417 = vmatpush2.bf16.msra.mxu0 0
    %1418 = vmatprep.subr.bf16.mxu0 0
    %1419 = vmatpush2.bf16.msra.mxu0 0
    %1420 = vmatprep.mubr.bf16.mxu0 0
    %1421 = vmatmul.mubr.bf16.gmra.mxu0 %v1345
    %v1422 = vpop.f32.mrf.mxu0
    %v1423 = vadd.f32 0.0, %v1422
    %v1424 = vpop.f32.mrf.mxu0
    %v1425 = vpop.f32.mrf.mxu0
    %v1426 = vpop.f32.mrf.mxu0
    %1427 = vdwg.mxu0
    %s1428 = scalar_lea.vmem [#allocation2], 18
    %v1429 = vld [vmem:[%s1428] sm:$0x7]
    %v1430 = vunpack.c.l.bf16 %v1429
    %v1431 = vadd.f32 %v1430, %v1382
    %v1432 = vxor.u32 %v1431, 2147483648
    %v1433 = vmul.f32 %v1432, 1.442695
    %v1434 = vpow.pop %v1433
    %v1435 = vadd.f32 %v1434, 1.0
    %v1436 = vrcp.pop %v1435
    %v1437 = vmul.f32 1.0, %v1436
    %v1439 = vrot.slane %v1430, 2
    %v1441 = vadd.f32 %v1439, %v1384
    %v1442 = vxor.u32 %v1441, 2147483648
    %v1443 = vmul.f32 %v1442, 1.442695
    %v1444 = vpow.pop %v1443
    %v1445 = vadd.f32 %v1444, 1.0
    %v1446 = vrcp.pop %v1445
    %v1447 = vmul.f32 1.0, %v1446
    %v1448 = vadd.f32 %v1423, %v540
    %v1449 = vmul.f32 %v1437, %v1448
    %v1450 = vrot.slane %v1430, 4
    %v1452 = vadd.f32 %v1450, %v1449
    %v1453 = vtanh.pop %v1452
    %v1454 = vsub.f32 1.0, %v1447
    %v1455 = vmul.f32 %v1454, %v1453
    %v1456 = vmul.f32 %v1447, %v1344
    %v1457 = vadd.f32 %v1455, %v1456
    %v1458 = vpack.c.bf16 %v1457, %v1457
    %1459 = vst [vmem:[%s1428 + $0x2] sm:$0x1] %v1458
    %1460 = vmatprep.subr.bf16.mxu0 %v644
    %1461 = vmatpush1.bf16.msra.mxu0 %v643
    %1462 = vmatprep.subr.bf16.mxu0 %v641
    %1463 = vmatpush1.bf16.msra.mxu0 %v640
    %1464 = vmatprep.subr.bf16.mxu0 %v638
    %1465 = vmatpush1.bf16.msra.mxu0 %v637
    %1466 = vmatprep.subr.bf16.mxu0 %v635
    %1467 = vmatpush1.bf16.msra.mxu0 %v634
    %1468 = vmatprep.subr.bf16.mxu0 %v632
    %1469 = vmatpush1.bf16.msra.mxu0 %v631
    %1470 = vmatprep.subr.bf16.mxu0 %v629
    %1471 = vmatpush1.bf16.msra.mxu0 %v628
    %1472 = vmatprep.subr.bf16.mxu0 %v626
    %1473 = vmatpush1.bf16.msra.mxu0 %v625
    %1474 = vmatprep.subr.bf16.mxu0 %v623
    %1475 = vmatpush1.bf16.msra.mxu0 %v622
    %1476 = vmatprep.subr.bf16.mxu0 0
    %1477 = vmatpush2.bf16.msra.mxu0 0
    %1478 = vmatprep.subr.bf16.mxu0 0
    %1479 = vmatpush2.bf16.msra.mxu0 0
    %1480 = vmatprep.subr.bf16.mxu0 0
    %1481 = vmatpush2.bf16.msra.mxu0 0
    %1482 = vmatprep.subr.bf16.mxu0 0
    %1483 = vmatpush2.bf16.msra.mxu0 0
    %1484 = vmatprep.subr.bf16.mxu0 0
    %1485 = vmatpush2.bf16.msra.mxu0 0
    %1486 = vmatprep.subr.bf16.mxu0 0
    %1487 = vmatpush2.bf16.msra.mxu0 0
    %1488 = vmatprep.subr.bf16.mxu0 0
    %1489 = vmatpush2.bf16.msra.mxu0 0
    %1490 = vmatprep.subr.bf16.mxu0 0
    %1491 = vmatpush2.bf16.msra.mxu0 0
    %1492 = vmatprep.mubr.bf16.mxu0 0
    %1493 = vmatmul.mubr.bf16.gmra.mxu0 %v1458
    %v1494 = vpop.f32.mrf.mxu0
    %v1495 = vadd.f32 0.0, %v1494
    %v1496 = vpop.f32.mrf.mxu0
    %v1497 = vadd.f32 0.0, %v1496
    %v1498 = vpop.f32.mrf.mxu0
    %v1499 = vpop.f32.mrf.mxu0
    %1500 = vdwg.mxu0
    %1501 = vmatprep.subr.bf16.mxu0 0
    %1502 = vmatpush1.bf16.msra.mxu0 %v645
    %1503 = vmatprep.subr.bf16.mxu0 0
    %1504 = vmatpush1.bf16.msra.mxu0 %v642
    %1505 = vmatprep.subr.bf16.mxu0 0
    %1506 = vmatpush1.bf16.msra.mxu0 %v639
    %1507 = vmatprep.subr.bf16.mxu0 0
    %1508 = vmatpush1.bf16.msra.mxu0 %v636
    %1509 = vmatprep.subr.bf16.mxu0 0
    %1510 = vmatpush1.bf16.msra.mxu0 %v633
    %1511 = vmatprep.subr.bf16.mxu0 0
    %1512 = vmatpush1.bf16.msra.mxu0 %v630
    %1513 = vmatprep.subr.bf16.mxu0 0
    %1514 = vmatpush1.bf16.msra.mxu0 %v627
    %1515 = vmatprep.subr.bf16.mxu0 0
    %1516 = vmatpush1.bf16.msra.mxu0 %v624
    %1517 = vmatprep.subr.bf16.mxu0 0
    %1518 = vmatpush2.bf16.msra.mxu0 0
    %1519 = vmatprep.subr.bf16.mxu0 0
    %1520 = vmatpush2.bf16.msra.mxu0 0
    %1521 = vmatprep.subr.bf16.mxu0 0
    %1522 = vmatpush2.bf16.msra.mxu0 0
    %1523 = vmatprep.subr.bf16.mxu0 0
    %1524 = vmatpush2.bf16.msra.mxu0 0
    %1525 = vmatprep.subr.bf16.mxu0 0
    %1526 = vmatpush2.bf16.msra.mxu0 0
    %1527 = vmatprep.subr.bf16.mxu0 0
    %1528 = vmatpush2.bf16.msra.mxu0 0
    %1529 = vmatprep.subr.bf16.mxu0 0
    %1530 = vmatpush2.bf16.msra.mxu0 0
    %1531 = vmatprep.subr.bf16.mxu0 0
    %1532 = vmatpush2.bf16.msra.mxu0 0
    %1533 = vmatprep.mubr.bf16.mxu0 0
    %1534 = vmatmul.mubr.bf16.gmra.mxu0 %v1458
    %v1535 = vpop.f32.mrf.mxu0
    %v1536 = vadd.f32 0.0, %v1535
    %v1537 = vpop.f32.mrf.mxu0
    %v1538 = vpop.f32.mrf.mxu0
    %v1539 = vpop.f32.mrf.mxu0
    %1540 = vdwg.mxu0
    %s1541 = scalar_lea.vmem [#allocation2], 21
    %v1542 = vld [vmem:[%s1541] sm:$0x7]
    %v1543 = vunpack.c.l.bf16 %v1542
    %v1544 = vadd.f32 %v1543, %v1495
    %v1545 = vxor.u32 %v1544, 2147483648
    %v1546 = vmul.f32 %v1545, 1.442695
    %v1547 = vpow.pop %v1546
    %v1548 = vadd.f32 %v1547, 1.0
    %v1549 = vrcp.pop %v1548
    %v1550 = vmul.f32 1.0, %v1549
    %v1552 = vrot.slane %v1543, 2
    %v1554 = vadd.f32 %v1552, %v1497
    %v1555 = vxor.u32 %v1554, 2147483648
    %v1556 = vmul.f32 %v1555, 1.442695
    %v1557 = vpow.pop %v1556
    %v1558 = vadd.f32 %v1557, 1.0
    %v1559 = vrcp.pop %v1558
    %v1560 = vmul.f32 1.0, %v1559
    %v1561 = vadd.f32 %v1536, %v540
    %v1562 = vmul.f32 %v1550, %v1561
    %v1563 = vrot.slane %v1543, 4
    %v1565 = vadd.f32 %v1563, %v1562
    %v1566 = vtanh.pop %v1565
    %v1567 = vsub.f32 1.0, %v1560
    %v1568 = vmul.f32 %v1567, %v1566
    %v1569 = vmul.f32 %v1560, %v1457
    %v1570 = vadd.f32 %v1568, %v1569
    %v1571 = vpack.c.bf16 %v1570, %v1570
    %1572 = vst [vmem:[%s1541 + $0x2] sm:$0x1] %v1571
    %v1573 = vld [vmem:[%s1] sm:$0x3]
    %vm1574 = vcmp.gt.s32.totalorder %v1573, 0
    %vm1575 = vcmp.gt.s32.totalorder %v1573, 1
    %vm1576 = vcmp.gt.s32.totalorder %v1573, 2
    %vm1577 = vcmp.gt.s32.totalorder %v1573, 3
    %vm1578 = vcmp.gt.s32.totalorder %v1573, 4
    %vm1579 = vcmp.gt.s32.totalorder %v1573, 5
    %vm1580 = vcmp.gt.s32.totalorder %v1573, 6
    %vm1581 = vcmp.gt.s32.totalorder %v1573, 7
    %v1582 = vld [vmem:[#allocation2 + $0x2] sm:$0x1]
    %v1583 = vld [vmem:[#allocation2 + $0x5] sm:$0x1]
    %v1584 = vld [vmem:[#allocation2 + $0x8] sm:$0x1]
    %v1585 = vld [vmem:[#allocation2 + $0xb] sm:$0x1]
    %v1586 = vld [vmem:[#allocation2 + $0xe] sm:$0x1]
    %v1587 = vld [vmem:[#allocation2 + $0x11] sm:$0x1]
    %v1588 = vld [vmem:[#allocation2 + $0x14] sm:$0x1]
    %v1589 = vld [vmem:[#allocation2 + $0x17] sm:$0x1]
    %v1590 = vsel %vm1574, 1, 0
    %v1591 = vsel %vm1575, 1, 0
    %v1592 = vsel %vm1576, 1, 0
    %v1593 = vsel %vm1577, 1, 0
    %v1594 = vsel %vm1578, 1, 0
    %v1595 = vsel %vm1579, 1, 0
    %v1596 = vsel %vm1580, 1, 0
    %v1597 = vsel %vm1581, 1, 0
    %1598 = vset.pattern.permute.xlu0 0
    %1599 = vperm.xlu0 %1598, %v1590
    %v1600 = vpop.permute.xlu0 %1599
    %1601 = vset.pattern.permute.xlu0 0
    %1602 = vperm.xlu0 %1601, %v1591
    %v1603 = vpop.permute.xlu0 %1602
    %1604 = vset.pattern.permute.xlu0 0
    %1605 = vperm.xlu0 %1604, %v1592
    %v1606 = vpop.permute.xlu0 %1605
    %1607 = vset.pattern.permute.xlu0 0
    %1608 = vperm.xlu0 %1607, %v1593
    %v1609 = vpop.permute.xlu0 %1608
    %1610 = vset.pattern.permute.xlu0 0
    %1611 = vperm.xlu0 %1610, %v1594
    %v1612 = vpop.permute.xlu0 %1611
    %1613 = vset.pattern.permute.xlu0 0
    %1614 = vperm.xlu0 %1613, %v1595
    %v1615 = vpop.permute.xlu0 %1614
    %1616 = vset.pattern.permute.xlu0 0
    %1617 = vperm.xlu0 %1616, %v1596
    %v1618 = vpop.permute.xlu0 %1617
    %1619 = vset.pattern.permute.xlu0 0
    %1620 = vperm.xlu0 %1619, %v1597
    %v1621 = vpop.permute.xlu0 %1620
    %vm1622 = vcmp.eq.s32.totalorder %v1600, 1
    %vm1623 = vcmp.eq.s32.totalorder %v1603, 1
    %vm1624 = vcmp.eq.s32.totalorder %v1606, 1
    %vm1625 = vcmp.eq.s32.totalorder %v1609, 1
    %vm1626 = vcmp.eq.s32.totalorder %v1612, 1
    %vm1627 = vcmp.eq.s32.totalorder %v1615, 1
    %vm1628 = vcmp.eq.s32.totalorder %v1618, 1
    %vm1629 = vcmp.eq.s32.totalorder %v1621, 1
    %v1630 = vsel %vm1622, 1, 0
    %v1631 = vsel %vm1623, 1, 0
    %v1632 = vsel %vm1624, 1, 0
    %v1633 = vsel %vm1625, 1, 0
    %v1634 = vsel %vm1626, 1, 0
    %v1635 = vsel %vm1627, 1, 0
    %v1636 = vsel %vm1628, 1, 0
    %v1637 = vsel %vm1629, 1, 0
    %v1638 = vpack.c.b16 %v1630, %v1630
    %v1639 = vpack.c.b16 %v1631, %v1631
    %v1640 = vpack.c.b16 %v1632, %v1632
    %v1641 = vpack.c.b16 %v1633, %v1633
    %v1642 = vpack.c.b16 %v1634, %v1634
    %v1643 = vpack.c.b16 %v1635, %v1635
    %v1644 = vpack.c.b16 %v1636, %v1636
    %v1645 = vpack.c.b16 %v1637, %v1637
    %vm1646 = vcmp.ne.s16.totalorder %v1638, 0
    %vm1647 = vcmp.ne.s16.totalorder %v1639, 0
    %vm1648 = vcmp.ne.s16.totalorder %v1640, 0
    %vm1649 = vcmp.ne.s16.totalorder %v1641, 0
    %vm1650 = vcmp.ne.s16.totalorder %v1642, 0
    %vm1651 = vcmp.ne.s16.totalorder %v1643, 0
    %vm1652 = vcmp.ne.s16.totalorder %v1644, 0
    %vm1653 = vcmp.ne.s16.totalorder %v1645, 0
    %v1654 = vsel %vm1646, %v1582, 0
    %v1655 = vsel %vm1647, %v1583, 0
    %v1656 = vsel %vm1648, %v1584, 0
    %v1657 = vsel %vm1649, %v1585, 0
    %v1658 = vsel %vm1650, %v1586, 0
    %v1659 = vsel %vm1651, %v1587, 0
    %v1660 = vsel %vm1652, %v1588, 0
    %v1661 = vsel %vm1653, %v1589, 0
    %v1662 = vld [vmem:[#allocation9] sm:$0xf]
    %v1663 = vld [vmem:[#allocation9 + $0x4] sm:$0xf]
    %v1664 = vld [vmem:[#allocation9 + $0x8] sm:$0xf]
    %v1665 = vld [vmem:[#allocation9 + $0xc] sm:$0xf]
    %v1666 = vld [vmem:[#allocation9 + $0x10] sm:$0xf]
    %v1667 = vld [vmem:[#allocation9 + $0x14] sm:$0xf]
    %v1668 = vld [vmem:[#allocation9 + $0x18] sm:$0xf]
    %v1669 = vld [vmem:[#allocation9 + $0x1c] sm:$0xf]
    %v1670 = vld [vmem:[#allocation9 + $0x20] sm:$0xf]
    %v1671 = vld [vmem:[#allocation9 + $0x24] sm:$0xf]
    %v1672 = vld [vmem:[#allocation9 + $0x28] sm:$0xf]
    %v1673 = vld [vmem:[#allocation9 + $0x2c] sm:$0xf]
    %v1674 = vld [vmem:[#allocation9 + $0x30] sm:$0xf]
    %v1675 = vld [vmem:[#allocation9 + $0x34] sm:$0xf]
    %v1676 = vld [vmem:[#allocation9 + $0x38] sm:$0xf]
    %v1677 = vld [vmem:[#allocation9 + $0x3c] sm:$0xf]
    %v1678 = vld [vmem:[%s7] sm:$0x1]
    %v1680 = vlaneseq
    %v1681 = vshrl.u32 %v1680, 7
    %v1682 = vsub.s32 0, %v1681
    %v1683 = vrot.slane %v1678, %v1682
    %v1693 = vcombine.low %v1654, %v1655
    %v1694 = vcombine.low %v1656, %v1657
    %v1695 = vcombine.low %v1658, %v1659
    %v1696 = vcombine.low %v1660, %v1661
    %v1698 = vunpack.c.l.s4 1966171168
    %v1699 = vunpack.c.0.s8 %v1698
    %v1700 = vlaneseq
    %v1701 = vshrl.u32 %v1700, 7
    %v1702 = vsub.s32 %v1699, %v1701
    %v1703 = vrot.slane %v1693, %v1702
    %v1705 = vunpack.c.l.s4 1966171168
    %v1706 = vunpack.c.0.s8 %v1705
    %v1707 = vlaneseq
    %v1708 = vshrl.u32 %v1707, 7
    %v1709 = vsub.s32 %v1706, %v1708
    %v1710 = vrot.slane %v1694, %v1709
    %v1712 = vunpack.c.l.s4 1966171168
    %v1713 = vunpack.c.0.s8 %v1712
    %v1714 = vlaneseq
    %v1715 = vshrl.u32 %v1714, 7
    %v1716 = vsub.s32 %v1713, %v1715
    %v1717 = vrot.slane %v1695, %v1716
    %v1719 = vunpack.c.l.s4 1966171168
    %v1720 = vunpack.c.0.s8 %v1719
    %v1721 = vlaneseq
    %v1722 = vshrl.u32 %v1721, 7
    %v1723 = vsub.s32 %v1720, %v1722
    %v1724 = vrot.slane %v1696, %v1723
    %v1725 = vcombine.low %v1703, %v1710
    %v1726 = vcombine.low %v1717, %v1724
    %v1728 = vunpack.c.l.s4 1966171168
    %v1729 = vunpack.c.0.s8 %v1728
    %v1730 = vlaneseq
    %v1731 = vshrl.u32 %v1730, 7
    %v1732 = vsub.s32 %v1729, %v1731
    %v1733 = vrot.slane %v1725, %v1732
    %v1735 = vunpack.c.l.s4 1966171168
    %v1736 = vunpack.c.0.s8 %v1735
    %v1737 = vlaneseq
    %v1738 = vshrl.u32 %v1737, 7
    %v1739 = vsub.s32 %v1736, %v1738
    %v1740 = vrot.slane %v1726, %v1739
    %v1741 = vcombine.low %v1733, %v1740
    %v1759 = vunpack.c.l.b16 %v1662
    %v1760 = vunpack.c.l.b16 %v1663
    %v1761 = vunpack.c.l.b16 %v1664
    %v1762 = vunpack.c.l.b16 %v1665
    %v1763 = vunpack.c.l.b16 %v1666
    %v1764 = vunpack.c.l.b16 %v1667
    %v1765 = vunpack.c.l.b16 %v1668
    %v1766 = vunpack.c.l.b16 %v1669
    %v1767 = vunpack.c.l.b16 %v1670
    %v1768 = vunpack.c.l.b16 %v1671
    %v1769 = vunpack.c.l.b16 %v1672
    %v1770 = vunpack.c.l.b16 %v1673
    %v1771 = vunpack.c.l.b16 %v1674
    %v1772 = vunpack.c.l.b16 %v1675
    %v1773 = vunpack.c.l.b16 %v1676
    %v1774 = vunpack.c.l.b16 %v1677
    %v1775 = vpack.c.b16 %v1760, %v1759
    %v1776 = vpack.c.b16 %v1762, %v1761
    %v1777 = vpack.c.b16 %v1764, %v1763
    %v1778 = vpack.c.b16 %v1766, %v1765
    %v1779 = vpack.c.b16 %v1768, %v1767
    %v1780 = vpack.c.b16 %v1770, %v1769
    %v1781 = vpack.c.b16 %v1772, %v1771
    %v1782 = vpack.c.b16 %v1774, %v1773
    %1791 = vmatprep.subr.bf16.mxu0 0
    %1792 = vmatpush1.bf16.msra.mxu0 %v1782
    %1793 = vmatprep.subr.bf16.mxu0 0
    %1794 = vmatpush1.bf16.msra.mxu0 %v1781
    %1795 = vmatprep.subr.bf16.mxu0 0
    %1796 = vmatpush1.bf16.msra.mxu0 %v1780
    %1797 = vmatprep.subr.bf16.mxu0 0
    %1798 = vmatpush1.bf16.msra.mxu0 %v1779
    %1799 = vmatprep.subr.bf16.mxu0 0
    %1800 = vmatpush1.bf16.msra.mxu0 %v1778
    %1801 = vmatprep.subr.bf16.mxu0 0
    %1802 = vmatpush1.bf16.msra.mxu0 %v1777
    %1803 = vmatprep.subr.bf16.mxu0 0
    %1804 = vmatpush1.bf16.msra.mxu0 %v1776
    %1805 = vmatprep.subr.bf16.mxu0 0
    %1806 = vmatpush1.bf16.msra.mxu0 %v1775
    %1807 = vmatprep.subr.bf16.mxu0 0
    %1808 = vmatpush2.bf16.msra.mxu0 0
    %1809 = vmatprep.subr.bf16.mxu0 0
    %1810 = vmatpush2.bf16.msra.mxu0 0
    %1811 = vmatprep.subr.bf16.mxu0 0
    %1812 = vmatpush2.bf16.msra.mxu0 0
    %1813 = vmatprep.subr.bf16.mxu0 0
    %1814 = vmatpush2.bf16.msra.mxu0 0
    %1815 = vmatprep.subr.bf16.mxu0 0
    %1816 = vmatpush2.bf16.msra.mxu0 0
    %1817 = vmatprep.subr.bf16.mxu0 0
    %1818 = vmatpush2.bf16.msra.mxu0 0
    %1819 = vmatprep.subr.bf16.mxu0 0
    %1820 = vmatpush2.bf16.msra.mxu0 0
    %1821 = vmatprep.subr.bf16.mxu0 0
    %1822 = vmatpush2.bf16.msra.mxu0 0
    %1823 = vmatprep.mubr.bf16.mxu0 0
    %1824 = vmatmul.mubr.bf16.gmra.mxu0 %v1741
    %v1825 = vpop.f32.mrf.mxu0
    %v1826 = vadd.f32 %v1683, %v1825
    %v1827 = vpop.f32.mrf.mxu0
    %v1828 = vpop.f32.mrf.mxu0
    %v1829 = vadd.f32 %v1683, %v1828
    %v1830 = vpop.f32.mrf.mxu0
    %1831 = vdwg.mxu0
    %v1834 = vcombine.high %v1826, %v1826
    %v1836 = vunpack.c.l.s4 1983009808
    %v1837 = vunpack.c.0.s8 %v1836
    %v1838 = vlaneseq
    %v1839 = vshrl.u32 %v1838, 7
    %v1840 = vsub.s32 %v1837, %v1839
    %v1841 = vrot.slane %v1826, %v1840
    %v1843 = vunpack.c.l.s4 1983009808
    %v1844 = vunpack.c.0.s8 %v1843
    %v1845 = vlaneseq
    %v1846 = vshrl.u32 %v1845, 7
    %v1847 = vsub.s32 %v1844, %v1846
    %v1848 = vrot.slane %v1834, %v1847
    %v1849 = vcombine.high %v1841, %v1841
    %v1850 = vcombine.high %v1848, %v1848
    %v1851 = vcombine.high %v1829, %v1829
    %v1853 = vunpack.c.l.s4 1983009808
    %v1854 = vunpack.c.0.s8 %v1853
    %v1855 = vlaneseq
    %v1856 = vshrl.u32 %v1855, 7
    %v1857 = vsub.s32 %v1854, %v1856
    %v1858 = vrot.slane %v1829, %v1857
    %v1860 = vunpack.c.l.s4 1983009808
    %v1861 = vunpack.c.0.s8 %v1860
    %v1862 = vlaneseq
    %v1863 = vshrl.u32 %v1862, 7
    %v1864 = vsub.s32 %v1861, %v1863
    %v1865 = vrot.slane %v1851, %v1864
    %v1866 = vcombine.high %v1858, %v1858
    %v1867 = vcombine.high %v1865, %v1865
    %1876 = vst [vmem:[#allocation11] sm:$0x3] %v1841
    %1877 = vst [vmem:[#allocation11 + $0x2] sm:$0x3] %v1849
    %1878 = vst [vmem:[#allocation11 + $0x4] sm:$0x3] %v1848
    %1879 = vst [vmem:[#allocation11 + $0x6] sm:$0x3] %v1850
    %1880 = vst [vmem:[#allocation11 + $0x8] sm:$0x3] %v1858
    %1881 = vst [vmem:[#allocation11 + $0xa] sm:$0x3] %v1866
    %1882 = vst [vmem:[#allocation11 + $0xc] sm:$0x3] %v1865
    %1883 = vst [vmem:[#allocation11 + $0xe] sm:$0x3] %v1867
    // Predicated region
    $region50: #{tpu_custom_call.1} parent=1 // pred_check
      _
    $region51: #{tpu_custom_call.1} parent=1 // pred_check_branch
      %1885 = sbr.rel (0) target = $region53
    $region52: #{tpu_custom_call.1} parent=1 // pred_region
      %s1887 = ssub.s32 256, 256
      %1888 = vsyncadd [#allocation5], %s1887
      %s1889 = sshll.u32 [#allocation11], 4
      %s1890 = int_to_ptr.vmem [resolvable:$true] %s1889
      %1895 = dma.vmem_to_hbm [thread:$0]  %s1890, 256, %s8, [#allocation5], 32, 32, 2
    $region53: #{tpu_custom_call.1} parent=1 // pred_fallthru
      _
    // Predicated region
    $region54: #{tpu_custom_call.1} parent=1 // pred_check
      _
    $region55: #{tpu_custom_call.1} parent=1 // pred_check_branch
      %1897 = sbr.rel (0) target = $region57
    $region56: #{tpu_custom_call.1} parent=1 // pred_region
      %1898 = dma.done [#allocation5], 256
    $region57: #{tpu_custom_call.1} parent=1 // pred_fallthru
      _
    %1899 = vsyncpa [#allocation4], 1
    %1900 = vsyncpa [#allocation7], 1
    %1901 = vsyncpa [#allocation10], 1
    %1902 = vsyncpa [#allocation5], 1

</llo_original>
